<compile_context>
chip_gen: v7x
topology: tpu7x:2x2x1
jax: 0.10.0
libtpu: 0.0.40
codegen_flags: <defaults>
</compile_context>

<pallas_src>
import functools

import jax
import jax.numpy as jnp
from jax import lax
from jax.experimental import pallas as pl
from jax.experimental.pallas import tpu as pltpu


# ----------------------------- fused attention kernel ------------------------
def _fused_attention_kernel(q_ref, x_ref, wq_ref, bq_ref, wkv_ref, bkv_ref,
                            wp_ref, bp_ref, o_ref, *, num_heads):
    """One batch element per grid step.

    q_ref   : (M, C)    queries for this batch element
    x_ref   : (N, C)    kv tokens for this batch element
    wq/bq   : (C, C), (1, C)    (softmax scale pre-folded by the wrapper)
    wkv/bkv : (C, 2C), (1, 2C)
    wp/bp   : (C, C), (1, C)
    o_ref   : (M, C)    lane-dense output block
    """
    C = wq_ref.shape[0]
    Dh = C // num_heads
    M = q_ref.shape[0]

    # Projections on the MXU with f32 accumulation.  Scale already in wq/bq.
    q = jnp.dot(q_ref[...], wq_ref[...],
                preferred_element_type=jnp.float32) + bq_ref[...]        # (M, C)
    kv = jnp.dot(x_ref[...], wkv_ref[...],
                 preferred_element_type=jnp.float32) + bkv_ref[...]      # (N, 2C)

    # Per-head attention.  Static head loop with static slices; each head's
    # context is folded into the matching row-slice of the output projection,
    # so the only HBM store is the single full (M, C) block at the end.
    acc = jnp.zeros((M, C), dtype=jnp.float32)
    for h in range(num_heads):
        lo = h * Dh
        qh = q[:, lo:lo + Dh]                          # (M, Dh)
        kh = kv[:, lo:lo + Dh]                         # (N, Dh)
        vh = kv[:, C + lo:C + lo + Dh]                 # (N, Dh)

        # qh @ kh^T without an explicit transpose: contract the last dims.
        s = lax.dot_general(qh, kh,
                            dimension_numbers=(((1,), (1,)), ((), ())),
                            preferred_element_type=jnp.float32)          # (M, N)

        # Numerically-stable softmax over the kv axis.
        s = s - jnp.max(s, axis=-1, keepdims=True)
        p = jnp.exp(s)
        p = p * pl.reciprocal(jnp.sum(p, axis=-1, keepdims=True), approx=False)

        ctx = jnp.dot(p, vh, preferred_element_type=jnp.float32)         # (M, Dh)

        # out += ctx @ Wp[h*Dh:(h+1)*Dh, :]  (static sublane slice of a ref).
        acc = acc + jnp.dot(ctx, wp_ref[lo:lo + Dh, :],
                            preferred_element_type=jnp.float32)

    o_ref[...] = (acc + bp_ref[...]).astype(o_ref.dtype)


# ----------------------------- full forward -----------------------------------
def attention_forward(x, q_flat, q_lengths, params, num_heads):
    """Mirrors Attention.forward for equal q_lengths, dropout prob = 0."""
    del q_lengths  # equal-length dense branch only (see TODO at top of file)
    B, N, C = x.shape
    H = num_heads
    Dh = C // H
    Tq = q_flat.shape[0]
    M = Tq // B
    scale = Dh ** (-0.5)

    # Pre-fold the softmax scale into the q projection (off the hot path):
    # softmax(((q Wq + bq) K^T) * s) == softmax((q (Wq*s) + (bq*s)) K^T).
    wq = (params["wq"] * scale).astype(q_flat.dtype)
    bq = (params["bq"] * scale).reshape(1, C).astype(q_flat.dtype)
    wkv = params["wkv"]
    bkv = params["bkv"].reshape(1, 2 * C)
    wp = params["wproj"]
    bp = params["bproj"].reshape(1, C)

    kern = functools.partial(_fused_attention_kernel, num_heads=H)

    return pl.pallas_call(
        kern,
        out_shape=jax.ShapeDtypeStruct((B * M, C), q_flat.dtype),
        grid=(B,),
        in_specs=[
            pl.BlockSpec((M, C), lambda b: (b, 0)),           # q block per batch
            pl.BlockSpec((None, N, C), lambda b: (b, 0, 0)),  # x block per batch
            pl.BlockSpec((C, C), lambda b: (0, 0)),           # wq (scaled)
            pl.BlockSpec((1, C), lambda b: (0, 0)),           # bq (scaled)
            pl.BlockSpec((C, 2 * C), lambda b: (0, 0)),       # wkv
            pl.BlockSpec((1, 2 * C), lambda b: (0, 0)),       # bkv
            pl.BlockSpec((C, C), lambda b: (0, 0)),           # wproj
            pl.BlockSpec((1, C), lambda b: (0, 0)),           # bproj
        ],
        out_specs=pl.BlockSpec((M, C), lambda b: (b, 0)),
        compiler_params=pltpu.CompilerParams(
            dimension_semantics=("parallel",)),
    )(q_flat, x, wq, bq, wkv, bkv, wp, bp)


# ----------------------------- reference (pure JAX) ---------------------------
def attention_reference(x, q_flat, params, num_heads):
    B, N, C = x.shape
    H = num_heads
    Dh = C // H
    Tq = q_flat.shape[0]
    M = Tq // B
    scale = Dh ** (-0.5)
    q_proj = q_flat @ params["wq"] + params["bq"]
    kv_proj = x.reshape(B * N, C) @ params["wkv"] + params["bkv"]
    qh = q_proj.reshape(Tq, H, Dh).transpose(1, 0, 2).reshape(H, B, M, Dh)
    kv = kv_proj.reshape(B, N, 2, H, Dh).transpose(2, 3, 0, 1, 4)
    k, v = kv[0], kv[1]
    attn = jnp.einsum("hbmd,hbnd->hbmn", qh, k) * scale
    attn = jax.nn.softmax(attn, axis=-1)
    out = jnp.einsum("hbmn,hbnd->hbmd", attn, v)
    out = out.transpose(1, 2, 0, 3).reshape(B * M, C)
    return out @ params["wproj"] + params["bproj"]


if __name__ == "__main__":
    # Small shapes: dim=32, num_heads=4 -> head_dim=8; B=2, N=16 kv tokens,
    # M=8 queries per batch element (equal q_lengths).
    B, N, C, H, M = 2, 16, 32, 4, 8
    key = jax.random.PRNGKey(0)
    kx, kq, k1, k2, k3, k4 = jax.random.split(key, 6)

    x = jax.random.normal(kx, (B, N, C), dtype=jnp.float32)
    q_flat = jax.random.normal(kq, (B * M, C), dtype=jnp.float32)
    q_lengths = jnp.full((B,), M, dtype=jnp.int32)

    # Deterministic synthetic parameters (qkv_bias=False -> q/kv biases zero).
    params = {
        "wq": 0.02 * jax.random.normal(k1, (C, C), dtype=jnp.float32),
        "bq": jnp.zeros((C,), dtype=jnp.float32),
        "wkv": 0.02 * jax.random.normal(k2, (C, 2 * C), dtype=jnp.float32),
        "bkv": jnp.zeros((2 * C,), dtype=jnp.float32),
        "wproj": 0.02 * jax.random.normal(k3, (C, C), dtype=jnp.float32),
        "bproj": 0.02 * jax.random.normal(k4, (C,), dtype=jnp.float32),
    }

    out = attention_forward(x, q_flat, q_lengths, params, num_heads=H)
    out = jax.block_until_ready(out)

    ref = attention_reference(x, q_flat, params, num_heads=H)
    assert out.shape == (B * M, C)
    assert jnp.allclose(out, ref, atol=1e-5, rtol=1e-5), "mismatch vs reference"

    print("KERNEL_OK")
</pallas_src>

<mosaic_0001>
module attributes {stable_mosaic.version = 11 : i64} {
  func.func @_fused_attention_kernel(%arg0: i32, %arg1: memref<8x32xf32, #tpu.memory_space<vmem>>, %arg2: memref<1x16x32xf32, #tpu.memory_space<vmem>>, %arg3: memref<32x32xf32, #tpu.memory_space<vmem>>, %arg4: memref<1x32xf32, #tpu.memory_space<vmem>>, %arg5: memref<32x64xf32, #tpu.memory_space<vmem>>, %arg6: memref<1x64xf32, #tpu.memory_space<vmem>>, %arg7: memref<32x32xf32, #tpu.memory_space<vmem>>, %arg8: memref<1x32xf32, #tpu.memory_space<vmem>>, %arg9: memref<8x32xf32, #tpu.memory_space<vmem>>) attributes {dimension_semantics = [#tpu.dimension_semantics<parallel>], iteration_bounds = array<i64: 2>, scalar_prefetch = 0 : i64, scratch_operands = 0 : i64, tpu.core_type = #tpu.core_type<tc>, window_params = [{transform_indices = @transform_0, window_bounds = array<i64: 8, 32>}, {transform_indices = @transform_1, window_bounds = array<i64: 1, 16, 32>}, {pipeline_mode = #tpu.pipeline_mode<synchronous>, transform_indices = @transform_2, window_bounds = array<i64: 32, 32>}, {pipeline_mode = #tpu.pipeline_mode<synchronous>, transform_indices = @transform_3, window_bounds = array<i64: 1, 32>}, {pipeline_mode = #tpu.pipeline_mode<synchronous>, transform_indices = @transform_4, window_bounds = array<i64: 32, 64>}, {pipeline_mode = #tpu.pipeline_mode<synchronous>, transform_indices = @transform_5, window_bounds = array<i64: 1, 64>}, {pipeline_mode = #tpu.pipeline_mode<synchronous>, transform_indices = @transform_6, window_bounds = array<i64: 32, 32>}, {pipeline_mode = #tpu.pipeline_mode<synchronous>, transform_indices = @transform_7, window_bounds = array<i64: 1, 32>}, {transform_indices = @transform_8, window_bounds = array<i64: 8, 32>}]} {
    %c0 = arith.constant 0 : index
    %c0_0 = arith.constant 0 : index
    %0 = vector.load %arg1[%c0, %c0_0] : memref<8x32xf32, #tpu.memory_space<vmem>>, vector<8x32xf32>
    %c0_1 = arith.constant 0 : index
    %c0_2 = arith.constant 0 : index
    %1 = vector.load %arg3[%c0_1, %c0_2] : memref<32x32xf32, #tpu.memory_space<vmem>>, vector<32x32xf32>
    %cst = arith.constant dense<0.000000e+00> : vector<8x32xf32>
    %2 = tpu.matmul %0, %1, %cst {dimension_numbers = #tpu.dot_dimension_numbers<[1], [0], [0], [1], [0, 0, 1, 1], [], []>} : vector<8x32xf32>, vector<32x32xf32>, vector<8x32xf32> -> vector<8x32xf32>
    %c0_3 = arith.constant 0 : index
    %c0_4 = arith.constant 0 : index
    %3 = vector.load %arg4[%c0_3, %c0_4] : memref<1x32xf32, #tpu.memory_space<vmem>>, vector<1x32xf32>
    %4 = vector.broadcast %3 : vector<1x32xf32> to vector<8x32xf32>
    %5 = arith.addf %2, %4 : vector<8x32xf32>
    %c0_5 = arith.constant 0 : index
    %c0_6 = arith.constant 0 : index
    %c0_7 = arith.constant 0 : index
    %6 = vector.load %arg2[%c0_5, %c0_6, %c0_7] : memref<1x16x32xf32, #tpu.memory_space<vmem>>, vector<1x16x32xf32>
    %7 = vector.shape_cast %6 : vector<1x16x32xf32> to vector<16x32xf32>
    %c0_8 = arith.constant 0 : index
    %c0_9 = arith.constant 0 : index
    %8 = vector.load %arg5[%c0_8, %c0_9] : memref<32x64xf32, #tpu.memory_space<vmem>>, vector<32x64xf32>
    %cst_10 = arith.constant dense<0.000000e+00> : vector<16x64xf32>
    %9 = tpu.matmul %7, %8, %cst_10 {dimension_numbers = #tpu.dot_dimension_numbers<[1], [0], [0], [1], [0, 0, 1, 1], [], []>} : vector<16x32xf32>, vector<32x64xf32>, vector<16x64xf32> -> vector<16x64xf32>
    %c0_11 = arith.constant 0 : index
    %c0_12 = arith.constant 0 : index
    %10 = vector.load %arg6[%c0_11, %c0_12] : memref<1x64xf32, #tpu.memory_space<vmem>>, vector<1x64xf32>
    %11 = vector.broadcast %10 : vector<1x64xf32> to vector<16x64xf32>
    %12 = arith.addf %9, %11 : vector<16x64xf32>
    %cst_13 = arith.constant 0.000000e+00 : f32
    %13 = vector.broadcast %cst_13 : f32 to vector<8x32xf32>
    %14 = vector.extract_strided_slice %5 {offsets = [0, 0], sizes = [8, 8], strides = [1, 1]} : vector<8x32xf32> to vector<8x8xf32>
    %15 = vector.extract_strided_slice %12 {offsets = [0, 0], sizes = [16, 8], strides = [1, 1]} : vector<16x64xf32> to vector<16x8xf32>
    %16 = vector.extract_strided_slice %12 {offsets = [0, 32], sizes = [16, 8], strides = [1, 1]} : vector<16x64xf32> to vector<16x8xf32>
    %cst_14 = arith.constant dense<0.000000e+00> : vector<8x16xf32>
    %17 = tpu.matmul %14, %15, %cst_14 {dimension_numbers = #tpu.dot_dimension_numbers<[1], [1], [0], [0], [0, 0, 1, 0], [], []>} : vector<8x8xf32>, vector<16x8xf32>, vector<8x16xf32> -> vector<8x16xf32>
    %cst_15 = arith.constant dense<0xFF800000> : vector<8xf32>
    %18 = vector.multi_reduction <maximumf>, %17, %cst_15 [1] : vector<8x16xf32> to vector<8xf32>
    %19 = vector.shape_cast %18 : vector<8xf32> to vector<8x1xf32>
    %20 = vector.broadcast %19 : vector<8x1xf32> to vector<8x16xf32>
    %21 = arith.subf %17, %20 : vector<8x16xf32>
    %22 = math.exp %21 : vector<8x16xf32>
    %cst_16 = arith.constant dense<0.000000e+00> : vector<8xf32>
    %23 = vector.multi_reduction <add>, %22, %cst_16 [1] : vector<8x16xf32> to vector<8xf32>
    %24 = vector.shape_cast %23 : vector<8xf32> to vector<8x1xf32>
    %25 = tpu.reciprocal %24 : vector<8x1xf32> -> vector<8x1xf32>
    %26 = vector.broadcast %25 : vector<8x1xf32> to vector<8x16xf32>
    %27 = arith.mulf %22, %26 : vector<8x16xf32>
    %cst_17 = arith.constant dense<0.000000e+00> : vector<8x8xf32>
    %28 = tpu.matmul %27, %16, %cst_17 {dimension_numbers = #tpu.dot_dimension_numbers<[1], [0], [0], [1], [0, 0, 1, 1], [], []>} : vector<8x16xf32>, vector<16x8xf32>, vector<8x8xf32> -> vector<8x8xf32>
    %c0_18 = arith.constant 0 : index
    %c0_19 = arith.constant 0 : index
    %29 = vector.load %arg7[%c0_18, %c0_19] : memref<32x32xf32, #tpu.memory_space<vmem>>, vector<8x32xf32>
    %cst_20 = arith.constant dense<0.000000e+00> : vector<8x32xf32>
    %30 = tpu.matmul %28, %29, %cst_20 {dimension_numbers = #tpu.dot_dimension_numbers<[1], [0], [0], [1], [0, 0, 1, 1], [], []>} : vector<8x8xf32>, vector<8x32xf32>, vector<8x32xf32> -> vector<8x32xf32>
    %31 = arith.addf %13, %30 : vector<8x32xf32>
    %32 = vector.extract_strided_slice %5 {offsets = [0, 8], sizes = [8, 8], strides = [1, 1]} : vector<8x32xf32> to vector<8x8xf32>
    %33 = vector.extract_strided_slice %12 {offsets = [0, 8], sizes = [16, 8], strides = [1, 1]} : vector<16x64xf32> to vector<16x8xf32>
    %34 = vector.extract_strided_slice %12 {offsets = [0, 40], sizes = [16, 8], strides = [1, 1]} : vector<16x64xf32> to vector<16x8xf32>
    %cst_21 = arith.constant dense<0.000000e+00> : vector<8x16xf32>
    %35 = tpu.matmul %32, %33, %cst_21 {dimension_numbers = #tpu.dot_dimension_numbers<[1], [1], [0], [0], [0, 0, 1, 0], [], []>} : vector<8x8xf32>, vector<16x8xf32>, vector<8x16xf32> -> vector<8x16xf32>
    %cst_22 = arith.constant dense<0xFF800000> : vector<8xf32>
    %36 = vector.multi_reduction <maximumf>, %35, %cst_22 [1] : vector<8x16xf32> to vector<8xf32>
    %37 = vector.shape_cast %36 : vector<8xf32> to vector<8x1xf32>
    %38 = vector.broadcast %37 : vector<8x1xf32> to vector<8x16xf32>
    %39 = arith.subf %35, %38 : vector<8x16xf32>
    %40 = math.exp %39 : vector<8x16xf32>
    %cst_23 = arith.constant dense<0.000000e+00> : vector<8xf32>
    %41 = vector.multi_reduction <add>, %40, %cst_23 [1] : vector<8x16xf32> to vector<8xf32>
    %42 = vector.shape_cast %41 : vector<8xf32> to vector<8x1xf32>
    %43 = tpu.reciprocal %42 : vector<8x1xf32> -> vector<8x1xf32>
    %44 = vector.broadcast %43 : vector<8x1xf32> to vector<8x16xf32>
    %45 = arith.mulf %40, %44 : vector<8x16xf32>
    %cst_24 = arith.constant dense<0.000000e+00> : vector<8x8xf32>
    %46 = tpu.matmul %45, %34, %cst_24 {dimension_numbers = #tpu.dot_dimension_numbers<[1], [0], [0], [1], [0, 0, 1, 1], [], []>} : vector<8x16xf32>, vector<16x8xf32>, vector<8x8xf32> -> vector<8x8xf32>
    %c8 = arith.constant 8 : index
    %c0_25 = arith.constant 0 : index
    %47 = vector.load %arg7[%c8, %c0_25] : memref<32x32xf32, #tpu.memory_space<vmem>>, vector<8x32xf32>
    %cst_26 = arith.constant dense<0.000000e+00> : vector<8x32xf32>
    %48 = tpu.matmul %46, %47, %cst_26 {dimension_numbers = #tpu.dot_dimension_numbers<[1], [0], [0], [1], [0, 0, 1, 1], [], []>} : vector<8x8xf32>, vector<8x32xf32>, vector<8x32xf32> -> vector<8x32xf32>
    %49 = arith.addf %31, %48 : vector<8x32xf32>
    %50 = vector.extract_strided_slice %5 {offsets = [0, 16], sizes = [8, 8], strides = [1, 1]} : vector<8x32xf32> to vector<8x8xf32>
    %51 = vector.extract_strided_slice %12 {offsets = [0, 16], sizes = [16, 8], strides = [1, 1]} : vector<16x64xf32> to vector<16x8xf32>
    %52 = vector.extract_strided_slice %12 {offsets = [0, 48], sizes = [16, 8], strides = [1, 1]} : vector<16x64xf32> to vector<16x8xf32>
    %cst_27 = arith.constant dense<0.000000e+00> : vector<8x16xf32>
    %53 = tpu.matmul %50, %51, %cst_27 {dimension_numbers = #tpu.dot_dimension_numbers<[1], [1], [0], [0], [0, 0, 1, 0], [], []>} : vector<8x8xf32>, vector<16x8xf32>, vector<8x16xf32> -> vector<8x16xf32>
    %cst_28 = arith.constant dense<0xFF800000> : vector<8xf32>
    %54 = vector.multi_reduction <maximumf>, %53, %cst_28 [1] : vector<8x16xf32> to vector<8xf32>
    %55 = vector.shape_cast %54 : vector<8xf32> to vector<8x1xf32>
    %56 = vector.broadcast %55 : vector<8x1xf32> to vector<8x16xf32>
    %57 = arith.subf %53, %56 : vector<8x16xf32>
    %58 = math.exp %57 : vector<8x16xf32>
    %cst_29 = arith.constant dense<0.000000e+00> : vector<8xf32>
    %59 = vector.multi_reduction <add>, %58, %cst_29 [1] : vector<8x16xf32> to vector<8xf32>
    %60 = vector.shape_cast %59 : vector<8xf32> to vector<8x1xf32>
    %61 = tpu.reciprocal %60 : vector<8x1xf32> -> vector<8x1xf32>
    %62 = vector.broadcast %61 : vector<8x1xf32> to vector<8x16xf32>
    %63 = arith.mulf %58, %62 : vector<8x16xf32>
    %cst_30 = arith.constant dense<0.000000e+00> : vector<8x8xf32>
    %64 = tpu.matmul %63, %52, %cst_30 {dimension_numbers = #tpu.dot_dimension_numbers<[1], [0], [0], [1], [0, 0, 1, 1], [], []>} : vector<8x16xf32>, vector<16x8xf32>, vector<8x8xf32> -> vector<8x8xf32>
    %c16 = arith.constant 16 : index
    %c0_31 = arith.constant 0 : index
    %65 = vector.load %arg7[%c16, %c0_31] : memref<32x32xf32, #tpu.memory_space<vmem>>, vector<8x32xf32>
    %cst_32 = arith.constant dense<0.000000e+00> : vector<8x32xf32>
    %66 = tpu.matmul %64, %65, %cst_32 {dimension_numbers = #tpu.dot_dimension_numbers<[1], [0], [0], [1], [0, 0, 1, 1], [], []>} : vector<8x8xf32>, vector<8x32xf32>, vector<8x32xf32> -> vector<8x32xf32>
    %67 = arith.addf %49, %66 : vector<8x32xf32>
    %68 = vector.extract_strided_slice %5 {offsets = [0, 24], sizes = [8, 8], strides = [1, 1]} : vector<8x32xf32> to vector<8x8xf32>
    %69 = vector.extract_strided_slice %12 {offsets = [0, 24], sizes = [16, 8], strides = [1, 1]} : vector<16x64xf32> to vector<16x8xf32>
    %70 = vector.extract_strided_slice %12 {offsets = [0, 56], sizes = [16, 8], strides = [1, 1]} : vector<16x64xf32> to vector<16x8xf32>
    %cst_33 = arith.constant dense<0.000000e+00> : vector<8x16xf32>
    %71 = tpu.matmul %68, %69, %cst_33 {dimension_numbers = #tpu.dot_dimension_numbers<[1], [1], [0], [0], [0, 0, 1, 0], [], []>} : vector<8x8xf32>, vector<16x8xf32>, vector<8x16xf32> -> vector<8x16xf32>
    %cst_34 = arith.constant dense<0xFF800000> : vector<8xf32>
    %72 = vector.multi_reduction <maximumf>, %71, %cst_34 [1] : vector<8x16xf32> to vector<8xf32>
    %73 = vector.shape_cast %72 : vector<8xf32> to vector<8x1xf32>
    %74 = vector.broadcast %73 : vector<8x1xf32> to vector<8x16xf32>
    %75 = arith.subf %71, %74 : vector<8x16xf32>
    %76 = math.exp %75 : vector<8x16xf32>
    %cst_35 = arith.constant dense<0.000000e+00> : vector<8xf32>
    %77 = vector.multi_reduction <add>, %76, %cst_35 [1] : vector<8x16xf32> to vector<8xf32>
    %78 = vector.shape_cast %77 : vector<8xf32> to vector<8x1xf32>
    %79 = tpu.reciprocal %78 : vector<8x1xf32> -> vector<8x1xf32>
    %80 = vector.broadcast %79 : vector<8x1xf32> to vector<8x16xf32>
    %81 = arith.mulf %76, %80 : vector<8x16xf32>
    %cst_36 = arith.constant dense<0.000000e+00> : vector<8x8xf32>
    %82 = tpu.matmul %81, %70, %cst_36 {dimension_numbers = #tpu.dot_dimension_numbers<[1], [0], [0], [1], [0, 0, 1, 1], [], []>} : vector<8x16xf32>, vector<16x8xf32>, vector<8x8xf32> -> vector<8x8xf32>
    %c24 = arith.constant 24 : index
    %c0_37 = arith.constant 0 : index
    %83 = vector.load %arg7[%c24, %c0_37] : memref<32x32xf32, #tpu.memory_space<vmem>>, vector<8x32xf32>
    %cst_38 = arith.constant dense<0.000000e+00> : vector<8x32xf32>
    %84 = tpu.matmul %82, %83, %cst_38 {dimension_numbers = #tpu.dot_dimension_numbers<[1], [0], [0], [1], [0, 0, 1, 1], [], []>} : vector<8x8xf32>, vector<8x32xf32>, vector<8x32xf32> -> vector<8x32xf32>
    %85 = arith.addf %67, %84 : vector<8x32xf32>
    %c0_39 = arith.constant 0 : index
    %c0_40 = arith.constant 0 : index
    %86 = vector.load %arg8[%c0_39, %c0_40] : memref<1x32xf32, #tpu.memory_space<vmem>>, vector<1x32xf32>
    %87 = vector.broadcast %86 : vector<1x32xf32> to vector<8x32xf32>
    %88 = arith.addf %85, %87 : vector<8x32xf32>
    %c0_41 = arith.constant 0 : index
    %c0_42 = arith.constant 0 : index
    %89 = vector.load %arg9[%c0_41, %c0_42] : memref<8x32xf32, #tpu.memory_space<vmem>>, vector<8x32xf32>
    tpu.vector_store %arg9[%c0_41, %c0_42], %88 {strides = array<i32>} : memref<8x32xf32, #tpu.memory_space<vmem>>, vector<8x32xf32>,
    return
  }
  func.func @transform_0(%arg0: i32) -> (i32, i32) {
    %c0_i32 = arith.constant 0 : i32
    %c0_i32_0 = arith.constant 0 : i32
    return %arg0, %c0_i32 : i32, i32
  }
  func.func @transform_1(%arg0: i32) -> (i32, i32, i32) {
    %c0_i32 = arith.constant 0 : i32
    %c0_i32_0 = arith.constant 0 : i32
    %c0_i32_1 = arith.constant 0 : i32
    return %arg0, %c0_i32, %c0_i32_0 : i32, i32, i32
  }
  func.func @transform_2(%arg0: i32) -> (i32, i32) {
    %c0_i32 = arith.constant 0 : i32
    %c0_i32_0 = arith.constant 0 : i32
    %c0_i32_1 = arith.constant 0 : i32
    return %c0_i32, %c0_i32_0 : i32, i32
  }
  func.func @transform_3(%arg0: i32) -> (i32, i32) {
    %c0_i32 = arith.constant 0 : i32
    %c0_i32_0 = arith.constant 0 : i32
    %c0_i32_1 = arith.constant 0 : i32
    return %c0_i32, %c0_i32_0 : i32, i32
  }
  func.func @transform_4(%arg0: i32) -> (i32, i32) {
    %c0_i32 = arith.constant 0 : i32
    %c0_i32_0 = arith.constant 0 : i32
    %c0_i32_1 = arith.constant 0 : i32
    return %c0_i32, %c0_i32_0 : i32, i32
  }
  func.func @transform_5(%arg0: i32) -> (i32, i32) {
    %c0_i32 = arith.constant 0 : i32
    %c0_i32_0 = arith.constant 0 : i32
    %c0_i32_1 = arith.constant 0 : i32
    return %c0_i32, %c0_i32_0 : i32, i32
  }
  func.func @transform_6(%arg0: i32) -> (i32, i32) {
    %c0_i32 = arith.constant 0 : i32
    %c0_i32_0 = arith.constant 0 : i32
    %c0_i32_1 = arith.constant 0 : i32
    return %c0_i32, %c0_i32_0 : i32, i32
  }
  func.func @transform_7(%arg0: i32) -> (i32, i32) {
    %c0_i32 = arith.constant 0 : i32
    %c0_i32_0 = arith.constant 0 : i32
    %c0_i32_1 = arith.constant 0 : i32
    return %c0_i32, %c0_i32_0 : i32, i32
  }
  func.func @transform_8(%arg0: i32) -> (i32, i32) {
    %c0_i32 = arith.constant 0 : i32
    %c0_i32_0 = arith.constant 0 : i32
    return %arg0, %c0_i32 : i32, i32
  }
}

</mosaic_0001>

<llo_original>
// kernel: tpu_custom_call.1
$region0: #{tpu_custom_call.1}
  #allocation0 [shape = 'u32[]', space=smem, size = 0x4, offset = 0x4, fixed_abs, tag = 'smem constant byte address 0x4 - core index']
  #allocation1 [shape = 'u32[144,128]{1,0:T(1,128)}', space=vmem, size = 0x12000, scoped, tag = 'internal scratch']
  %s0 = inlined_call_operand.hbm [shape: f32[16,32], index: 0, kind: input, shape index: {}]
  %s1 = inlined_call_operand.hbm [shape: f32[2,16,32], index: 1, kind: input, shape index: {}]
  %s2 = inlined_call_operand.hbm [shape: f32[32,32], index: 2, kind: input, shape index: {}]
  %s3 = inlined_call_operand.vmem [shape: f32[1,32], index: 3, kind: input, shape index: {}]
  %s4 = inlined_call_operand.hbm [shape: f32[32,64], index: 4, kind: input, shape index: {}]
  %s5 = inlined_call_operand.vmem [shape: f32[1,64], index: 5, kind: input, shape index: {}]
  %s6 = inlined_call_operand.hbm [shape: f32[32,32], index: 6, kind: input, shape index: {}]
  %s7 = inlined_call_operand.vmem [shape: f32[1,32], index: 7, kind: input, shape index: {}]
  %s8 = inlined_call_operand.hbm [shape: f32[16,32], index: 8, kind: output, shape index: {}]
  %s9 = sld [smem:[#allocation0]]
  $region85: #{tpu_custom_call.1} parent=0
    _
  %s11 = ssub.s32 1, %s9
  %s12 = scalar_select 0, %s11, %s9
  $region1: #{tpu_custom_call.1} parent=0
    #allocation2 [shape = 'u8[8192]{0}', space=vmem, size = 0x2000, scoped, tag = 'input window, operand 0']
    #allocation3 [shape = 's32[2]{0}', space=sflag, size = 0x8, scoped, tag = 'scoped memory for tpu_custom_call.1']
    #allocation4 [shape = 's32[2]{0}', space=sflag, size = 0x8, scoped, tag = 'scoped memory for tpu_custom_call.1']
    #allocation5 [shape = 'u8[16384]{0}', space=vmem, size = 0x4000, scoped, tag = 'input window, operand 1']
    #allocation6 [shape = 's32[2]{0}', space=sflag, size = 0x8, scoped, tag = 'scoped memory for tpu_custom_call.1']
    #allocation7 [shape = 'u8[16384]{0}', space=vmem, size = 0x4000, scoped, tag = 'input window, operand 2, single buffered']
    #allocation8 [shape = 'u8[16384]{0}', space=vmem, size = 0x4000, scoped, tag = 'input window, operand 4, single buffered']
    #allocation9 [shape = 's32[1]{0}', space=sflag, size = 0x4, scoped, tag = 'scoped memory for tpu_custom_call.1']
    #allocation10 [shape = 'u8[16384]{0}', space=vmem, size = 0x4000, scoped, tag = 'input window, operand 6, single buffered']
    #allocation11 [shape = 'u8[8192]{0}', space=vmem, size = 0x2000, scoped, tag = 'output window, operand 0']
    %13 = vsyncpa [#allocation3], 0
    %s14 = scalar_lea.sflag [#allocation3], 1
    %15 = vsyncpa %s14, 0
    %16 = vsyncpa [#allocation6], 0
    %s17 = scalar_lea.sflag [#allocation6], 1
    %18 = vsyncpa %s17, 0
    %19 = vsyncpa [#allocation9], 0
    %20 = vsyncpa [#allocation4], 0
    %s21 = scalar_lea.sflag [#allocation4], 1
    %22 = vsyncpa %s21, 0
    loop: start=0, step=1, limit=4
    $region2: #{tpu_custom_call.1} parent=1 // loop_pre_header
      _
    $region3: #{tpu_custom_call.1} parent=1 // loop_header
      %s24 = sphi 0, %s28
      %p25 = scmp.ge.s32.totalorder %s24, 4
      %s34 = sphi 0, %s36
      %s37 = sphi 0, %s34
      %s38 = sphi 0, %s37
      %s54 = sphi 0, %s38
      %s60 = sphi 0, %s62
      %s63 = sphi 0, %s60
      %s64 = sphi 0, %s63
      %s80 = sphi 0, %s64
      %s84 = sphi 0, %s84
      %s86 = sphi 0, %s84
      %s87 = sphi 0, %s86
      %s101 = sphi 0, %s87
      %s105 = sphi 0, %s105
      %s107 = sphi 0, %s105
      %s108 = sphi 0, %s107
      %s122 = sphi 0, %s108
      %s126 = sphi 0, %s126
      %s128 = sphi 0, %s126
      %s129 = sphi 0, %s128
      %s143 = sphi 0, %s129
      %s147 = sphi 0, %s147
      %s149 = sphi 0, %s147
      %s150 = sphi 0, %s149
      %s164 = sphi 0, %s150
      %s168 = sphi 0, %s168
      %s170 = sphi 0, %s168
      %s171 = sphi 0, %s170
      %s185 = sphi 0, %s171
      %s189 = sphi 0, %s189
      %s191 = sphi 0, %s189
      %s192 = sphi 0, %s191
      %s206 = sphi 0, %s192
      %s212 = sphi 0, %s214
      %s215 = sphi 0, %s212
      %s216 = sphi 0, %s215
      %s232 = sphi 0, %s216
    $region4: #{tpu_custom_call.1} parent=1 // loop_header_branch
      %27 = sbr.rel (%p25) target = $region8
    $region5: #{tpu_custom_call.1} parent=1 // loop_body
      %s29 = ssub.s32 %s24, 1
      %s30 = ssub.s32 %s24, 2
      %s31 = sadd.s32 %s24, 1
      %s32 = ssub.s32 %s24, %s31
      %p33 = scmp.eq.s32.totalorder %s32, 0
      %s35 = sadd.s32 %s34, 1
      %s36 = scalar_select %p33, %s34, %s35
      %p39 = pneg %p33
      %p40 = scmp.eq.s32.totalorder %s24, 1
      %p41 = por %p39, %p40
      %p42 = scmp.ne.s32.totalorder %s34, %s37
      %p43 = scmp.eq.s32.totalorder %s24, 0
      %p44 = por %p42, %p43
      %p45 = scmp.ne.s32.totalorder %s34, %s37
      %p46 = scmp.eq.s32.totalorder %s29, 1
      %p47 = por %p45, %p46
      %p48 = scmp.ne.s32.totalorder %s37, %s38
      %p49 = scmp.eq.s32.totalorder %s29, 0
      %p50 = por %p48, %p49
      %p51 = scmp.ne.s32.totalorder %s37, %s38
      %p52 = scmp.eq.s32.totalorder %s30, 1
      %p53 = por %p51, %p52
      %p55 = scmp.ne.s32.totalorder %s38, %s54
      %p56 = scmp.eq.s32.totalorder %s30, 0
      %p57 = por %p55, %p56
      %s58 = ssub.s32 %s24, %s31
      %p59 = scmp.eq.s32.totalorder %s58, 0
      %s61 = sadd.s32 %s60, 1
      %s62 = scalar_select %p59, %s60, %s61
      %p65 = pneg %p59
      %p66 = scmp.eq.s32.totalorder %s24, 1
      %p67 = por %p65, %p66
      %p68 = scmp.ne.s32.totalorder %s60, %s63
      %p69 = scmp.eq.s32.totalorder %s24, 0
      %p70 = por %p68, %p69
      %p71 = scmp.ne.s32.totalorder %s60, %s63
      %p72 = scmp.eq.s32.totalorder %s29, 1
      %p73 = por %p71, %p72
      %p74 = scmp.ne.s32.totalorder %s63, %s64
      %p75 = scmp.eq.s32.totalorder %s29, 0
      %p76 = por %p74, %p75
      %p77 = scmp.ne.s32.totalorder %s63, %s64
      %p78 = scmp.eq.s32.totalorder %s30, 1
      %p79 = por %p77, %p78
      %p81 = scmp.ne.s32.totalorder %s64, %s80
      %p82 = scmp.eq.s32.totalorder %s30, 0
      %p83 = por %p81, %p82
      %s85 = sadd.s32 %s84, 1
      %p88 = scmp.eq.s32.totalorder %s24, 1
      %p89 = scmp.ne.s32.totalorder %s84, %s86
      %p90 = scmp.eq.s32.totalorder %s24, 0
      %p91 = por %p89, %p90
      %p92 = scmp.ne.s32.totalorder %s84, %s86
      %p93 = scmp.eq.s32.totalorder %s29, 1
      %p94 = por %p92, %p93
      %p95 = scmp.ne.s32.totalorder %s86, %s87
      %p96 = scmp.eq.s32.totalorder %s29, 0
      %p97 = por %p95, %p96
      %p98 = scmp.ne.s32.totalorder %s86, %s87
      %p99 = scmp.eq.s32.totalorder %s30, 1
      %p100 = por %p98, %p99
      %p102 = scmp.ne.s32.totalorder %s87, %s101
      %p103 = scmp.eq.s32.totalorder %s30, 0
      %p104 = por %p102, %p103
      %s106 = sadd.s32 %s105, 1
      %p109 = scmp.eq.s32.totalorder %s24, 1
      %p110 = scmp.ne.s32.totalorder %s105, %s107
      %p111 = scmp.eq.s32.totalorder %s24, 0
      %p112 = por %p110, %p111
      %p113 = scmp.ne.s32.totalorder %s105, %s107
      %p114 = scmp.eq.s32.totalorder %s29, 1
      %p115 = por %p113, %p114
      %p116 = scmp.ne.s32.totalorder %s107, %s108
      %p117 = scmp.eq.s32.totalorder %s29, 0
      %p118 = por %p116, %p117
      %p119 = scmp.ne.s32.totalorder %s107, %s108
      %p120 = scmp.eq.s32.totalorder %s30, 1
      %p121 = por %p119, %p120
      %p123 = scmp.ne.s32.totalorder %s108, %s122
      %p124 = scmp.eq.s32.totalorder %s30, 0
      %p125 = por %p123, %p124
      %s127 = sadd.s32 %s126, 1
      %p130 = scmp.eq.s32.totalorder %s24, 1
      %p131 = scmp.ne.s32.totalorder %s126, %s128
      %p132 = scmp.eq.s32.totalorder %s24, 0
      %p133 = por %p131, %p132
      %p134 = scmp.ne.s32.totalorder %s126, %s128
      %p135 = scmp.eq.s32.totalorder %s29, 1
      %p136 = por %p134, %p135
      %p137 = scmp.ne.s32.totalorder %s128, %s129
      %p138 = scmp.eq.s32.totalorder %s29, 0
      %p139 = por %p137, %p138
      %p140 = scmp.ne.s32.totalorder %s128, %s129
      %p141 = scmp.eq.s32.totalorder %s30, 1
      %p142 = por %p140, %p141
      %p144 = scmp.ne.s32.totalorder %s129, %s143
      %p145 = scmp.eq.s32.totalorder %s30, 0
      %p146 = por %p144, %p145
      %s148 = sadd.s32 %s147, 1
      %p151 = scmp.eq.s32.totalorder %s24, 1
      %p152 = scmp.ne.s32.totalorder %s147, %s149
      %p153 = scmp.eq.s32.totalorder %s24, 0
      %p154 = por %p152, %p153
      %p155 = scmp.ne.s32.totalorder %s147, %s149
      %p156 = scmp.eq.s32.totalorder %s29, 1
      %p157 = por %p155, %p156
      %p158 = scmp.ne.s32.totalorder %s149, %s150
      %p159 = scmp.eq.s32.totalorder %s29, 0
      %p160 = por %p158, %p159
      %p161 = scmp.ne.s32.totalorder %s149, %s150
      %p162 = scmp.eq.s32.totalorder %s30, 1
      %p163 = por %p161, %p162
      %p165 = scmp.ne.s32.totalorder %s150, %s164
      %p166 = scmp.eq.s32.totalorder %s30, 0
      %p167 = por %p165, %p166
      %s169 = sadd.s32 %s168, 1
      %p172 = scmp.eq.s32.totalorder %s24, 1
      %p173 = scmp.ne.s32.totalorder %s168, %s170
      %p174 = scmp.eq.s32.totalorder %s24, 0
      %p175 = por %p173, %p174
      %p176 = scmp.ne.s32.totalorder %s168, %s170
      %p177 = scmp.eq.s32.totalorder %s29, 1
      %p178 = por %p176, %p177
      %p179 = scmp.ne.s32.totalorder %s170, %s171
      %p180 = scmp.eq.s32.totalorder %s29, 0
      %p181 = por %p179, %p180
      %p182 = scmp.ne.s32.totalorder %s170, %s171
      %p183 = scmp.eq.s32.totalorder %s30, 1
      %p184 = por %p182, %p183
      %p186 = scmp.ne.s32.totalorder %s171, %s185
      %p187 = scmp.eq.s32.totalorder %s30, 0
      %p188 = por %p186, %p187
      %s190 = sadd.s32 %s189, 1
      %p193 = scmp.eq.s32.totalorder %s24, 1
      %p194 = scmp.ne.s32.totalorder %s189, %s191
      %p195 = scmp.eq.s32.totalorder %s24, 0
      %p196 = por %p194, %p195
      %p197 = scmp.ne.s32.totalorder %s189, %s191
      %p198 = scmp.eq.s32.totalorder %s29, 1
      %p199 = por %p197, %p198
      %p200 = scmp.ne.s32.totalorder %s191, %s192
      %p201 = scmp.eq.s32.totalorder %s29, 0
      %p202 = por %p200, %p201
      %p203 = scmp.ne.s32.totalorder %s191, %s192
      %p204 = scmp.eq.s32.totalorder %s30, 1
      %p205 = por %p203, %p204
      %p207 = scmp.ne.s32.totalorder %s192, %s206
      %p208 = scmp.eq.s32.totalorder %s30, 0
      %p209 = por %p207, %p208
      %s210 = ssub.s32 %s24, %s31
      %p211 = scmp.eq.s32.totalorder %s210, 0
      %s213 = sadd.s32 %s212, 1
      %s214 = scalar_select %p211, %s212, %s213
      %p217 = pneg %p211
      %p218 = scmp.eq.s32.totalorder %s24, 1
      %p219 = por %p217, %p218
      %p220 = scmp.ne.s32.totalorder %s212, %s215
      %p221 = scmp.eq.s32.totalorder %s24, 0
      %p222 = por %p220, %p221
      %p223 = scmp.ne.s32.totalorder %s212, %s215
      %p224 = scmp.eq.s32.totalorder %s29, 1
      %p225 = por %p223, %p224
      %p226 = scmp.ne.s32.totalorder %s215, %s216
      %p227 = scmp.eq.s32.totalorder %s29, 0
      %p228 = por %p226, %p227
      %p229 = scmp.ne.s32.totalorder %s215, %s216
      %p230 = scmp.eq.s32.totalorder %s30, 1
      %p231 = por %p229, %p230
      %p233 = scmp.ne.s32.totalorder %s216, %s232
      %p234 = scmp.eq.s32.totalorder %s30, 0
      %p235 = por %p233, %p234
      %p236 = scmp.le.s32.totalorder 1, %s24
      %p237 = scmp.lt.s32.totalorder %s24, 3
      %p238 = pnand %p236, %p237
      %p239 = pneg %p238
      // Predicated region
      $region9: #{tpu_custom_call.1} parent=5 // pred_check
        _
      $region10: #{tpu_custom_call.1} parent=5 // pred_check_branch
        %241 = sbr.rel (%p238) target = $region12
      $region11: #{tpu_custom_call.1} parent=5 // pred_region
        %s242 = ssub.s32 %s24, 1
        // Predicated region
        $region13: #{tpu_custom_call.1} parent=11 // pred_check
          %p243 = pneg %p97
        $region14: #{tpu_custom_call.1} parent=11 // pred_check_branch
          %245 = sbr.rel (%p243) target = $region16
        $region15: #{tpu_custom_call.1} parent=11 // pred_region
          %s247 = ssub.s32 512, 512
          %248 = vsyncadd [#allocation6], %s247
          %s249 = sshll.u32 [#allocation7], 4
          %s250 = int_to_ptr.vmem [resolvable:$true] %s249
          %255 = dma.hbm_to_vmem [thread:$0]  %s2, 512, %s250, [#allocation6], 128, 128, 8
        $region16: #{tpu_custom_call.1} parent=11 // pred_fallthru
          _
        // Predicated region
        $region17: #{tpu_custom_call.1} parent=11 // pred_check
          %p256 = pneg %p118
        $region18: #{tpu_custom_call.1} parent=11 // pred_check_branch
          %258 = sbr.rel (%p256) target = $region20
        $region19: #{tpu_custom_call.1} parent=11 // pred_region
          _
        $region20: #{tpu_custom_call.1} parent=11 // pred_fallthru
          _
        // Predicated region
        $region21: #{tpu_custom_call.1} parent=11 // pred_check
          %p259 = pneg %p139
        $region22: #{tpu_custom_call.1} parent=11 // pred_check_branch
          %261 = sbr.rel (%p259) target = $region24
        $region23: #{tpu_custom_call.1} parent=11 // pred_region
          %s263 = ssub.s32 512, 512
          %264 = vsyncadd [#allocation9], %s263
          %s265 = sshll.u32 [#allocation8], 4
          %s266 = int_to_ptr.vmem [resolvable:$true] %s265
          %271 = dma.hbm_to_vmem [thread:$0]  %s4, 512, %s266, [#allocation9], 128, 128, 8
        $region24: #{tpu_custom_call.1} parent=11 // pred_fallthru
          _
        // Predicated region
        $region25: #{tpu_custom_call.1} parent=11 // pred_check
          %p272 = pneg %p160
        $region26: #{tpu_custom_call.1} parent=11 // pred_check_branch
          %274 = sbr.rel (%p272) target = $region28
        $region27: #{tpu_custom_call.1} parent=11 // pred_region
          _
        $region28: #{tpu_custom_call.1} parent=11 // pred_fallthru
          _
        // Predicated region
        $region29: #{tpu_custom_call.1} parent=11 // pred_check
          %p275 = pneg %p181
        $region30: #{tpu_custom_call.1} parent=11 // pred_check_branch
          %277 = sbr.rel (%p275) target = $region32
        $region31: #{tpu_custom_call.1} parent=11 // pred_region
          %s279 = ssub.s32 512, 512
          %280 = vsyncadd [#allocation9], %s279
          %s281 = sshll.u32 [#allocation10], 4
          %s282 = int_to_ptr.vmem [resolvable:$true] %s281
          %287 = dma.hbm_to_vmem [thread:$0]  %s6, 512, %s282, [#allocation9], 128, 128, 8
        $region32: #{tpu_custom_call.1} parent=11 // pred_fallthru
          _
        // Predicated region
        $region33: #{tpu_custom_call.1} parent=11 // pred_check
          %p288 = pneg %p202
        $region34: #{tpu_custom_call.1} parent=11 // pred_check_branch
          %290 = sbr.rel (%p288) target = $region36
        $region35: #{tpu_custom_call.1} parent=11 // pred_region
          _
        $region36: #{tpu_custom_call.1} parent=11 // pred_fallthru
          _
      $region12: #{tpu_custom_call.1} parent=5 // pred_fallthru
        _
      %p291 = scmp.lt.s32.totalorder %s24, 2
      // Predicated region
      $region37: #{tpu_custom_call.1} parent=5 // pred_check
        %p292 = pneg %p291
      $region38: #{tpu_custom_call.1} parent=5 // pred_check_branch
        %294 = sbr.rel (%p292) target = $region40
      $region39: #{tpu_custom_call.1} parent=5 // pred_region
        // Predicated region
        $region41: #{tpu_custom_call.1} parent=39 // pred_check
          %p295 = pneg %p44
        $region42: #{tpu_custom_call.1} parent=39 // pred_check_branch
          %297 = sbr.rel (%p295) target = $region44
        $region43: #{tpu_custom_call.1} parent=39 // pred_region
          %s298 = sand.u32 %s34, 1
          %s299 = scalar_lea.sflag [#allocation3], %s298
          %s300 = sand.u32 %s34, 1
          %s301 = smul.addr %s300, 8
          %s302 = scalar_lea.vmem [#allocation2], %s301
          %s304 = ssub.s32 128, 128
          %305 = vsyncadd %s299, %s304
          %s306 = smul.addr %s24, 128
          %s307 = scalar_lea.hbm %s0, %s306
          %s309 = sshll.u32 %s302, 4
          %s310 = int_to_ptr.vmem [resolvable:$true] %s309
          %312 = dma.hbm_to_vmem [thread:$0]  %s307, 128, %s310, %s299
        $region44: #{tpu_custom_call.1} parent=39 // pred_fallthru
          _
        // Predicated region
        $region45: #{tpu_custom_call.1} parent=39 // pred_check
          %p313 = pneg %p70
        $region46: #{tpu_custom_call.1} parent=39 // pred_check_branch
          %315 = sbr.rel (%p313) target = $region48
        $region47: #{tpu_custom_call.1} parent=39 // pred_region
          %s316 = sand.u32 %s24, 1
          %s317 = scalar_lea.sflag [#allocation6], %s316
          %s318 = sand.u32 %s60, 1
          %s319 = smul.addr %s318, 16
          %s320 = scalar_lea.vmem [#allocation5], %s319
          %s322 = ssub.s32 256, 256
          %323 = vsyncadd %s317, %s322
          %s324 = smul.addr %s24, 2
          %s325 = smul.addr %s324, 128
          %s326 = scalar_lea.hbm %s1, %s325
          %s327 = sshll.u32 %s320, 4
          %s328 = int_to_ptr.vmem [resolvable:$true] %s327
          %333 = dma.hbm_to_vmem [thread:$0]  %s326, 256, %s328, %s317, 128, 128, 8
        $region48: #{tpu_custom_call.1} parent=39 // pred_fallthru
          _
      $region40: #{tpu_custom_call.1} parent=5 // pred_fallthru
        _
      %p334 = scmp.le.s32.totalorder 1, %s24
      %p335 = scmp.lt.s32.totalorder %s24, 3
      %p336 = pnand %p334, %p335
      %p337 = pneg %p336
      // Predicated region
      $region49: #{tpu_custom_call.1} parent=5 // pred_check
        _
      $region50: #{tpu_custom_call.1} parent=5 // pred_check_branch
        %339 = sbr.rel (%p336) target = $region52
      $region51: #{tpu_custom_call.1} parent=5 // pred_region
        %s340 = ssub.s32 %s24, 1
        %s341 = sand.u32 %s37, 1
        %s342 = scalar_lea.sflag [#allocation3], %s341
        %s343 = sand.u32 %s37, 1
        %s344 = smul.addr %s343, 8
        %s345 = scalar_lea.vmem [#allocation2], %s344
        // Predicated region
        $region53: #{tpu_custom_call.1} parent=51 // pred_check
          %p346 = pneg %p50
        $region54: #{tpu_custom_call.1} parent=51 // pred_check_branch
          %348 = sbr.rel (%p346) target = $region56
        $region55: #{tpu_custom_call.1} parent=51 // pred_region
          %349 = dma.done %s342, 128
        $region56: #{tpu_custom_call.1} parent=51 // pred_fallthru
          _
        %s350 = sand.u32 %s29, 1
        %s351 = scalar_lea.sflag [#allocation6], %s350
        %s352 = sand.u32 %s63, 1
        %s353 = smul.addr %s352, 16
        %s354 = scalar_lea.vmem [#allocation5], %s353
        // Predicated region
        $region57: #{tpu_custom_call.1} parent=51 // pred_check
          %p355 = pneg %p76
        $region58: #{tpu_custom_call.1} parent=51 // pred_check_branch
          %357 = sbr.rel (%p355) target = $region60
        $region59: #{tpu_custom_call.1} parent=51 // pred_region
          %358 = dma.done %s351, 256
        $region60: #{tpu_custom_call.1} parent=51 // pred_fallthru
          _
        // Predicated region
        $region61: #{tpu_custom_call.1} parent=51 // pred_check
          %p359 = pneg %p97
        $region62: #{tpu_custom_call.1} parent=51 // pred_check_branch
          %361 = sbr.rel (%p359) target = $region64
        $region63: #{tpu_custom_call.1} parent=51 // pred_region
          %362 = dma.done [#allocation6], 512
        $region64: #{tpu_custom_call.1} parent=51 // pred_fallthru
          _
        // Predicated region
        $region65: #{tpu_custom_call.1} parent=51 // pred_check
          %p363 = pneg %p139
        $region66: #{tpu_custom_call.1} parent=51 // pred_check_branch
          %365 = sbr.rel (%p363) target = $region68
        $region67: #{tpu_custom_call.1} parent=51 // pred_region
          %366 = dma.done [#allocation9], 512
        $region68: #{tpu_custom_call.1} parent=51 // pred_fallthru
          _
        // Predicated region
        $region69: #{tpu_custom_call.1} parent=51 // pred_check
          %p367 = pneg %p181
        $region70: #{tpu_custom_call.1} parent=51 // pred_check_branch
          %369 = sbr.rel (%p367) target = $region72
        $region71: #{tpu_custom_call.1} parent=51 // pred_region
          %370 = dma.done [#allocation9], 512
        $region72: #{tpu_custom_call.1} parent=51 // pred_fallthru
          _
        %s371 = sand.u32 %s37, 1
        %s372 = scalar_lea.sflag [#allocation3], %s371
        %s373 = sand.u32 %s37, 1
        %s374 = smul.addr %s373, 8
        %s375 = scalar_lea.vmem [#allocation2], %s374
        %p376 = pneg %p50
        %p377 = pneg %p47
        %s378 = sand.u32 %s29, 1
        %s379 = scalar_lea.sflag [#allocation6], %s378
        %s380 = sand.u32 %s63, 1
        %s381 = smul.addr %s380, 16
        %s382 = scalar_lea.vmem [#allocation5], %s381
        %p383 = pneg %p76
        %p384 = pneg %p73
        %p385 = pneg %p97
        %p386 = pneg %p94
        %p387 = pneg %p118
        %p388 = pneg %p115
        %p389 = pneg %p139
        %p390 = pneg %p136
        %p391 = pneg %p160
        %p392 = pneg %p157
        %p393 = pneg %p181
        %p394 = pneg %p178
        %p395 = pneg %p202
        %p396 = pneg %p199
        %p397 = pneg %p228
        %p398 = pneg %p225
        %s399 = sand.u32 %s215, 1
        %s400 = scalar_lea.sflag [#allocation4], %s399
        %s401 = sand.u32 %s215, 1
        %s402 = smul.addr %s401, 8
        %s403 = scalar_lea.vmem [#allocation11], %s402
        %v404 = vld [vmem:[%s345] sm:$0xff]
        %v405 = vld [vmem:[#allocation7] sm:$0xff]
        %v406 = vld [vmem:[#allocation7 + $0x8] sm:$0xff]
        %v407 = vld [vmem:[#allocation7 + $0x10] sm:$0xff]
        %v408 = vld [vmem:[#allocation7 + $0x18] sm:$0xff]
        %v409 = vld [vmem:[%s3] sm:$0x1]
        %v411 = vlaneseq
        %v412 = vshrl.u32 %v411, 7
        %v413 = vsub.s32 0, %v412
        %v414 = vrot.slane %v409, %v413
        %vm416 = vcmask 261120
        %v418 = vsel %vm416, %v404, 0
        %420 = vmatprep.subr.mxu0 0.0
        %421 = vmatpush1.msra.mxu0 %v405
        %422 = vmatprep.subr.mxu0 0.0
        %423 = vmatpush1.msra.mxu0 %v406
        %424 = vmatprep.subr.mxu0 0.0
        %425 = vmatpush1.msra.mxu0 %v407
        %426 = vmatprep.subr.mxu0 0.0
        %427 = vmatpush1.msra.mxu0 %v408
        %428 = vmatprep.subr.mxu0 0.0
        %429 = vmatpush1.msra.mxu0 0.0
        %430 = vmatprep.subr.mxu0 0.0
        %431 = vmatpush1.msra.mxu0 0.0
        %432 = vmatprep.subr.mxu0 0.0
        %433 = vmatpush1.msra.mxu0 0.0
        %434 = vmatprep.subr.mxu0 0.0
        %435 = vmatpush1.msra.mxu0 0.0
        %436 = vmatprep.subr.mxu0 0.0
        %437 = vmatpush1.msra.mxu0 0.0
        %438 = vmatprep.subr.mxu0 0.0
        %439 = vmatpush1.msra.mxu0 0.0
        %440 = vmatprep.subr.mxu0 0.0
        %441 = vmatpush1.msra.mxu0 0.0
        %442 = vmatprep.subr.mxu0 0.0
        %443 = vmatpush1.msra.mxu0 0.0
        %444 = vmatprep.subr.mxu0 0.0
        %445 = vmatpush1.msra.mxu0 0.0
        %446 = vmatprep.subr.mxu0 0.0
        %447 = vmatpush1.msra.mxu0 0.0
        %448 = vmatprep.subr.mxu0 0.0
        %449 = vmatpush1.msra.mxu0 0.0
        %450 = vmatprep.subr.mxu0 0.0
        %451 = vmatpush1.msra.mxu0 0.0
        %452 = vmatprep.subr.mxu0 0.0
        %453 = vmatpush1.msra.mxu0 0.0
        %454 = vmatprep.subr.mxu0 0.0
        %455 = vmatpush1.msra.mxu0 0.0
        %456 = vmatprep.subr.mxu0 0.0
        %457 = vmatpush1.msra.mxu0 0.0
        %458 = vmatprep.subr.mxu0 0.0
        %459 = vmatpush1.msra.mxu0 0.0
        %460 = vmatprep.subr.mxu0 0.0
        %461 = vmatpush1.msra.mxu0 0.0
        %462 = vmatprep.subr.mxu0 0.0
        %463 = vmatpush1.msra.mxu0 0.0
        %464 = vmatprep.subr.mxu0 0.0
        %465 = vmatpush1.msra.mxu0 0.0
        %466 = vmatprep.subr.mxu0 0.0
        %467 = vmatpush1.msra.mxu0 0.0
        %468 = vmatprep.subr.mxu0 0.0
        %469 = vmatpush1.msra.mxu0 0.0
        %470 = vmatprep.subr.mxu0 0.0
        %471 = vmatpush1.msra.mxu0 0.0
        %472 = vmatprep.subr.mxu0 0.0
        %473 = vmatpush1.msra.mxu0 0.0
        %474 = vmatprep.subr.mxu0 0.0
        %475 = vmatpush1.msra.mxu0 0.0
        %476 = vmatprep.subr.mxu0 0.0
        %477 = vmatpush1.msra.mxu0 0.0
        %478 = vmatprep.subr.mxu0 0.0
        %479 = vmatpush1.msra.mxu0 0.0
        %480 = vmatprep.subr.mxu0 0.0
        %481 = vmatpush1.msra.mxu0 0.0
        %482 = vmatprep.subr.mxu0 0.0
        %483 = vmatpush1.msra.mxu0 0.0
        %484 = vmatprep.mubr.f32.mxu0 0.0
        %485 = vmatmul.mubr.f32.gmra.mrb[0].mxu0 %v418
        %v486 = vpop.f32.mrb[0].mxu0
        %v487 = vadd.f32 %v414, %v486
        %v488 = vpop.f32.mrb[0].mxu0
        %489 = vdwg.mxu0
        %v490 = vld [vmem:[%s354] sm:$0xff]
        %v491 = vld [vmem:[%s354 + $0x8] sm:$0xff]
        %v492 = vld [vmem:[#allocation8] sm:$0xff]
        %v493 = vld [vmem:[#allocation8 + $0x8] sm:$0xff]
        %v494 = vld [vmem:[#allocation8 + $0x10] sm:$0xff]
        %v495 = vld [vmem:[#allocation8 + $0x18] sm:$0xff]
        %v496 = vld [vmem:[%s5] sm:$0x1]
        %v498 = vlaneseq
        %v499 = vshrl.u32 %v498, 7
        %v500 = vsub.s32 0, %v499
        %v501 = vrot.slane %v496, %v500
        %v504 = vsel %vm416, %v490, 0
        %v507 = vsel %vm416, %v491, 0
        %509 = vmatprep.subr.mxu0 0.0
        %510 = vmatpush1.msra.mxu0 %v492
        %511 = vmatprep.subr.mxu0 0.0
        %512 = vmatpush1.msra.mxu0 %v493
        %513 = vmatprep.subr.mxu0 0.0
        %514 = vmatpush1.msra.mxu0 %v494
        %515 = vmatprep.subr.mxu0 0.0
        %516 = vmatpush1.msra.mxu0 %v495
        %517 = vmatprep.subr.mxu0 0.0
        %518 = vmatpush1.msra.mxu0 0.0
        %519 = vmatprep.subr.mxu0 0.0
        %520 = vmatpush1.msra.mxu0 0.0
        %521 = vmatprep.subr.mxu0 0.0
        %522 = vmatpush1.msra.mxu0 0.0
        %523 = vmatprep.subr.mxu0 0.0
        %524 = vmatpush1.msra.mxu0 0.0
        %525 = vmatprep.subr.mxu0 0.0
        %526 = vmatpush1.msra.mxu0 0.0
        %527 = vmatprep.subr.mxu0 0.0
        %528 = vmatpush1.msra.mxu0 0.0
        %529 = vmatprep.subr.mxu0 0.0
        %530 = vmatpush1.msra.mxu0 0.0
        %531 = vmatprep.subr.mxu0 0.0
        %532 = vmatpush1.msra.mxu0 0.0
        %533 = vmatprep.subr.mxu0 0.0
        %534 = vmatpush1.msra.mxu0 0.0
        %535 = vmatprep.subr.mxu0 0.0
        %536 = vmatpush1.msra.mxu0 0.0
        %537 = vmatprep.subr.mxu0 0.0
        %538 = vmatpush1.msra.mxu0 0.0
        %539 = vmatprep.subr.mxu0 0.0
        %540 = vmatpush1.msra.mxu0 0.0
        %541 = vmatprep.subr.mxu0 0.0
        %542 = vmatpush1.msra.mxu0 0.0
        %543 = vmatprep.subr.mxu0 0.0
        %544 = vmatpush1.msra.mxu0 0.0
        %545 = vmatprep.subr.mxu0 0.0
        %546 = vmatpush1.msra.mxu0 0.0
        %547 = vmatprep.subr.mxu0 0.0
        %548 = vmatpush1.msra.mxu0 0.0
        %549 = vmatprep.subr.mxu0 0.0
        %550 = vmatpush1.msra.mxu0 0.0
        %551 = vmatprep.subr.mxu0 0.0
        %552 = vmatpush1.msra.mxu0 0.0
        %553 = vmatprep.subr.mxu0 0.0
        %554 = vmatpush1.msra.mxu0 0.0
        %555 = vmatprep.subr.mxu0 0.0
        %556 = vmatpush1.msra.mxu0 0.0
        %557 = vmatprep.subr.mxu0 0.0
        %558 = vmatpush1.msra.mxu0 0.0
        %559 = vmatprep.subr.mxu0 0.0
        %560 = vmatpush1.msra.mxu0 0.0
        %561 = vmatprep.subr.mxu0 0.0
        %562 = vmatpush1.msra.mxu0 0.0
        %563 = vmatprep.subr.mxu0 0.0
        %564 = vmatpush1.msra.mxu0 0.0
        %565 = vmatprep.subr.mxu0 0.0
        %566 = vmatpush1.msra.mxu0 0.0
        %567 = vmatprep.subr.mxu0 0.0
        %568 = vmatpush1.msra.mxu0 0.0
        %569 = vmatprep.subr.mxu0 0.0
        %570 = vmatpush1.msra.mxu0 0.0
        %571 = vmatprep.subr.mxu0 0.0
        %572 = vmatpush1.msra.mxu0 0.0
        %573 = vmatprep.mubr.f32.mxu0 0.0
        %574 = vmatmul.mubr.f32.gmra.mrb[0].mxu0 %v504
        %v575 = vpop.f32.mrb[0].mxu0
        %v576 = vadd.f32 %v501, %v575
        %v577 = vpop.f32.mrb[0].mxu0
        %578 = vmatprep.mubr.f32.mxu0 0.0
        %579 = vmatmul.mubr.f32.gmra.mrb[0].mxu0 %v507
        %v580 = vpop.f32.mrb[0].mxu0
        %v581 = vadd.f32 %v501, %v580
        %v582 = vpop.f32.mrb[0].mxu0
        %583 = vdwg.mxu0
        %vm584 = vcmask 64512
        %v586 = vsel %vm584, %v487, 0
        %v589 = vsel %vm584, %v576, 0
        %v592 = vsel %vm584, %v581, 0
        %594 = vmatprep.subr.mxu0 0.0
        %595 = vmatpush1.xpose.msra.mxu0 %v589
        %596 = vmatprep.subr.mxu0 0.0
        %597 = vmatpush1.xpose.msra.mxu0 %v592
        %598 = vmatprep.subr.mxu0 0.0
        %599 = vmatpush1.xpose.msra.mxu0 0.0
        %600 = vmatprep.subr.mxu0 0.0
        %601 = vmatpush1.xpose.msra.mxu0 0.0
        %602 = vmatprep.subr.mxu0 0.0
        %603 = vmatpush1.xpose.msra.mxu0 0.0
        %604 = vmatprep.subr.mxu0 0.0
        %605 = vmatpush1.xpose.msra.mxu0 0.0
        %606 = vmatprep.subr.mxu0 0.0
        %607 = vmatpush1.xpose.msra.mxu0 0.0
        %608 = vmatprep.subr.mxu0 0.0
        %609 = vmatpush1.xpose.msra.mxu0 0.0
        %610 = vmatprep.subr.mxu0 0.0
        %611 = vmatpush1.xpose.msra.mxu0 0.0
        %612 = vmatprep.subr.mxu0 0.0
        %613 = vmatpush1.xpose.msra.mxu0 0.0
        %614 = vmatprep.subr.mxu0 0.0
        %615 = vmatpush1.xpose.msra.mxu0 0.0
        %616 = vmatprep.subr.mxu0 0.0
        %617 = vmatpush1.xpose.msra.mxu0 0.0
        %618 = vmatprep.subr.mxu0 0.0
        %619 = vmatpush1.xpose.msra.mxu0 0.0
        %620 = vmatprep.subr.mxu0 0.0
        %621 = vmatpush1.xpose.msra.mxu0 0.0
        %622 = vmatprep.subr.mxu0 0.0
        %623 = vmatpush1.xpose.msra.mxu0 0.0
        %624 = vmatprep.subr.mxu0 0.0
        %625 = vmatpush1.xpose.msra.mxu0 0.0
        %626 = vmatprep.subr.mxu0 0.0
        %627 = vmatpush1.xpose.msra.mxu0 0.0
        %628 = vmatprep.subr.mxu0 0.0
        %629 = vmatpush1.xpose.msra.mxu0 0.0
        %630 = vmatprep.subr.mxu0 0.0
        %631 = vmatpush1.xpose.msra.mxu0 0.0
        %632 = vmatprep.subr.mxu0 0.0
        %633 = vmatpush1.xpose.msra.mxu0 0.0
        %634 = vmatprep.subr.mxu0 0.0
        %635 = vmatpush1.xpose.msra.mxu0 0.0
        %636 = vmatprep.subr.mxu0 0.0
        %637 = vmatpush1.xpose.msra.mxu0 0.0
        %638 = vmatprep.subr.mxu0 0.0
        %639 = vmatpush1.xpose.msra.mxu0 0.0
        %640 = vmatprep.subr.mxu0 0.0
        %641 = vmatpush1.xpose.msra.mxu0 0.0
        %642 = vmatprep.subr.mxu0 0.0
        %643 = vmatpush1.xpose.msra.mxu0 0.0
        %644 = vmatprep.subr.mxu0 0.0
        %645 = vmatpush1.xpose.msra.mxu0 0.0
        %646 = vmatprep.subr.mxu0 0.0
        %647 = vmatpush1.xpose.msra.mxu0 0.0
        %648 = vmatprep.subr.mxu0 0.0
        %649 = vmatpush1.xpose.msra.mxu0 0.0
        %650 = vmatprep.subr.mxu0 0.0
        %651 = vmatpush1.xpose.msra.mxu0 0.0
        %652 = vmatprep.subr.mxu0 0.0
        %653 = vmatpush1.xpose.msra.mxu0 0.0
        %654 = vmatprep.subr.mxu0 0.0
        %655 = vmatpush1.xpose.msra.mxu0 0.0
        %656 = vmatprep.subr.mxu0 0.0
        %657 = vmatpush1.xpose.msra.mxu0 0.0
        %658 = vmatprep.mubr.f32.mxu0 0.0
        %659 = vmatmul.mubr.f32.gmra.mrb[0].mxu0 %v586
        %v660 = vpop.f32.mrb[0].mxu0
        %v661 = vadd.f32 0.0, %v660
        %v662 = vpop.f32.mrb[0].mxu0
        %663 = vdwg.mxu0
        %vm664 = vcmask 130048
        %v665 = vsel %vm664, %v661, -inf
        %666 = vmax.xlane.f32.xlu0 %v665
        %v667 = vpop.xlane.xlu0 %666
        %v668 = vsub.f32 %v661, %v667
        %v669 = vmul.f32 %v668, 1.442695
        %v670 = vpow.pop %v669
        %v671 = vsel %vm664, %v670, 0.0
        %672 = vadd.xlane.f32.xlu0 %v671
        %v673 = vpop.xlane.xlu0 %672
        %v674 = vrcp.pop %v673
        %v675 = vmul.f32 %v670, %v674
        %676 = vrot.lane.b32.xlu0 %v576, 96
        %v677 = vpop.permute.xlu0 %676
        %678 = vrot.lane.b32.xlu0 %v581, 96
        %v679 = vpop.permute.xlu0 %678
        %v683 = vsel %vm664, %v675, 0
        %685 = vmatprep.subr.mxu0 0.0
        %686 = vmatpush1.msra.mxu0 %v677
        %687 = vmatprep.subr.mxu0 0.0
        %688 = vmatpush1.msra.mxu0 %v679
        %689 = vmatprep.subr.mxu0 0.0
        %690 = vmatpush1.msra.mxu0 0.0
        %691 = vmatprep.subr.mxu0 0.0
        %692 = vmatpush1.msra.mxu0 0.0
        %693 = vmatprep.subr.mxu0 0.0
        %694 = vmatpush1.msra.mxu0 0.0
        %695 = vmatprep.subr.mxu0 0.0
        %696 = vmatpush1.msra.mxu0 0.0
        %697 = vmatprep.subr.mxu0 0.0
        %698 = vmatpush1.msra.mxu0 0.0
        %699 = vmatprep.subr.mxu0 0.0
        %700 = vmatpush1.msra.mxu0 0.0
        %701 = vmatprep.subr.mxu0 0.0
        %702 = vmatpush1.msra.mxu0 0.0
        %703 = vmatprep.subr.mxu0 0.0
        %704 = vmatpush1.msra.mxu0 0.0
        %705 = vmatprep.subr.mxu0 0.0
        %706 = vmatpush1.msra.mxu0 0.0
        %707 = vmatprep.subr.mxu0 0.0
        %708 = vmatpush1.msra.mxu0 0.0
        %709 = vmatprep.subr.mxu0 0.0
        %710 = vmatpush1.msra.mxu0 0.0
        %711 = vmatprep.subr.mxu0 0.0
        %712 = vmatpush1.msra.mxu0 0.0
        %713 = vmatprep.subr.mxu0 0.0
        %714 = vmatpush1.msra.mxu0 0.0
        %715 = vmatprep.subr.mxu0 0.0
        %716 = vmatpush1.msra.mxu0 0.0
        %717 = vmatprep.subr.mxu0 0.0
        %718 = vmatpush1.msra.mxu0 0.0
        %719 = vmatprep.subr.mxu0 0.0
        %720 = vmatpush1.msra.mxu0 0.0
        %721 = vmatprep.subr.mxu0 0.0
        %722 = vmatpush1.msra.mxu0 0.0
        %723 = vmatprep.subr.mxu0 0.0
        %724 = vmatpush1.msra.mxu0 0.0
        %725 = vmatprep.subr.mxu0 0.0
        %726 = vmatpush1.msra.mxu0 0.0
        %727 = vmatprep.subr.mxu0 0.0
        %728 = vmatpush1.msra.mxu0 0.0
        %729 = vmatprep.subr.mxu0 0.0
        %730 = vmatpush1.msra.mxu0 0.0
        %731 = vmatprep.subr.mxu0 0.0
        %732 = vmatpush1.msra.mxu0 0.0
        %733 = vmatprep.subr.mxu0 0.0
        %734 = vmatpush1.msra.mxu0 0.0
        %735 = vmatprep.subr.mxu0 0.0
        %736 = vmatpush1.msra.mxu0 0.0
        %737 = vmatprep.subr.mxu0 0.0
        %738 = vmatpush1.msra.mxu0 0.0
        %739 = vmatprep.subr.mxu0 0.0
        %740 = vmatpush1.msra.mxu0 0.0
        %741 = vmatprep.subr.mxu0 0.0
        %742 = vmatpush1.msra.mxu0 0.0
        %743 = vmatprep.subr.mxu0 0.0
        %744 = vmatpush1.msra.mxu0 0.0
        %745 = vmatprep.subr.mxu0 0.0
        %746 = vmatpush1.msra.mxu0 0.0
        %747 = vmatprep.subr.mxu0 0.0
        %748 = vmatpush1.msra.mxu0 0.0
        %749 = vmatprep.mubr.f32.mxu0 0.0
        %750 = vmatmul.mubr.f32.gmra.mrb[0].mxu0 %v683
        %v751 = vpop.f32.mrb[0].mxu0
        %v752 = vadd.f32 0.0, %v751
        %v753 = vpop.f32.mrb[0].mxu0
        %754 = vdwg.mxu0
        %v755 = vld [vmem:[#allocation10] sm:$0xff]
        %756 = vrot.lane.b32.xlu0 %v487, 120
        %v757 = vpop.permute.xlu0 %756
        %758 = vrot.lane.b32.xlu0 %v576, 120
        %v759 = vpop.permute.xlu0 %758
        %760 = vrot.lane.b32.xlu0 %v581, 120
        %v761 = vpop.permute.xlu0 %760
        %v762 = vsel %vm584, %v757, 0
        %v764 = vsel %vm584, %v759, 0
        %v766 = vsel %vm584, %v761, 0
        %768 = vmatprep.subr.mxu0 0.0
        %769 = vmatpush1.xpose.msra.mxu0 %v764
        %770 = vmatprep.subr.mxu0 0.0
        %771 = vmatpush1.xpose.msra.mxu0 %v766
        %772 = vmatprep.subr.mxu0 0.0
        %773 = vmatpush1.xpose.msra.mxu0 0.0
        %774 = vmatprep.subr.mxu0 0.0
        %775 = vmatpush1.xpose.msra.mxu0 0.0
        %776 = vmatprep.subr.mxu0 0.0
        %777 = vmatpush1.xpose.msra.mxu0 0.0
        %778 = vmatprep.subr.mxu0 0.0
        %779 = vmatpush1.xpose.msra.mxu0 0.0
        %780 = vmatprep.subr.mxu0 0.0
        %781 = vmatpush1.xpose.msra.mxu0 0.0
        %782 = vmatprep.subr.mxu0 0.0
        %783 = vmatpush1.xpose.msra.mxu0 0.0
        %784 = vmatprep.subr.mxu0 0.0
        %785 = vmatpush1.xpose.msra.mxu0 0.0
        %786 = vmatprep.subr.mxu0 0.0
        %787 = vmatpush1.xpose.msra.mxu0 0.0
        %788 = vmatprep.subr.mxu0 0.0
        %789 = vmatpush1.xpose.msra.mxu0 0.0
        %790 = vmatprep.subr.mxu0 0.0
        %791 = vmatpush1.xpose.msra.mxu0 0.0
        %792 = vmatprep.subr.mxu0 0.0
        %793 = vmatpush1.xpose.msra.mxu0 0.0
        %794 = vmatprep.subr.mxu0 0.0
        %795 = vmatpush1.xpose.msra.mxu0 0.0
        %796 = vmatprep.subr.mxu0 0.0
        %797 = vmatpush1.xpose.msra.mxu0 0.0
        %798 = vmatprep.subr.mxu0 0.0
        %799 = vmatpush1.xpose.msra.mxu0 0.0
        %800 = vmatprep.subr.mxu0 0.0
        %801 = vmatpush1.xpose.msra.mxu0 0.0
        %802 = vmatprep.subr.mxu0 0.0
        %803 = vmatpush1.xpose.msra.mxu0 0.0
        %804 = vmatprep.subr.mxu0 0.0
        %805 = vmatpush1.xpose.msra.mxu0 0.0
        %806 = vmatprep.subr.mxu0 0.0
        %807 = vmatpush1.xpose.msra.mxu0 0.0
        %808 = vmatprep.subr.mxu0 0.0
        %809 = vmatpush1.xpose.msra.mxu0 0.0
        %810 = vmatprep.subr.mxu0 0.0
        %811 = vmatpush1.xpose.msra.mxu0 0.0
        %812 = vmatprep.subr.mxu0 0.0
        %813 = vmatpush1.xpose.msra.mxu0 0.0
        %814 = vmatprep.subr.mxu0 0.0
        %815 = vmatpush1.xpose.msra.mxu0 0.0
        %816 = vmatprep.subr.mxu0 0.0
        %817 = vmatpush1.xpose.msra.mxu0 0.0
        %818 = vmatprep.subr.mxu0 0.0
        %819 = vmatpush1.xpose.msra.mxu0 0.0
        %820 = vmatprep.subr.mxu0 0.0
        %821 = vmatpush1.xpose.msra.mxu0 0.0
        %822 = vmatprep.subr.mxu0 0.0
        %823 = vmatpush1.xpose.msra.mxu0 0.0
        %824 = vmatprep.subr.mxu0 0.0
        %825 = vmatpush1.xpose.msra.mxu0 0.0
        %826 = vmatprep.subr.mxu0 0.0
        %827 = vmatpush1.xpose.msra.mxu0 0.0
        %828 = vmatprep.subr.mxu0 0.0
        %829 = vmatpush1.xpose.msra.mxu0 0.0
        %830 = vmatprep.subr.mxu0 0.0
        %831 = vmatpush1.xpose.msra.mxu0 0.0
        %832 = vmatprep.mubr.f32.mxu0 0.0
        %833 = vmatmul.mubr.f32.gmra.mrb[0].mxu0 %v762
        %v834 = vpop.f32.mrb[0].mxu0
        %v835 = vadd.f32 0.0, %v834
        %v836 = vpop.f32.mrb[0].mxu0
        %837 = vdwg.mxu0
        %v838 = vsel %vm664, %v835, -inf
        %839 = vmax.xlane.f32.xlu0 %v838
        %v840 = vpop.xlane.xlu0 %839
        %v841 = vsub.f32 %v835, %v840
        %v842 = vmul.f32 %v841, 1.442695
        %v843 = vpow.pop %v842
        %v844 = vsel %vm664, %v843, 0.0
        %845 = vadd.xlane.f32.xlu0 %v844
        %v846 = vpop.xlane.xlu0 %845
        %v847 = vrcp.pop %v846
        %v848 = vmul.f32 %v843, %v847
        %849 = vrot.lane.b32.xlu0 %v576, 88
        %v850 = vpop.permute.xlu0 %849
        %851 = vrot.lane.b32.xlu0 %v581, 88
        %v852 = vpop.permute.xlu0 %851
        %v856 = vsel %vm664, %v848, 0
        %858 = vmatprep.subr.mxu0 0.0
        %859 = vmatpush1.msra.mxu0 %v850
        %860 = vmatprep.subr.mxu0 0.0
        %861 = vmatpush1.msra.mxu0 %v852
        %862 = vmatprep.subr.mxu0 0.0
        %863 = vmatpush1.msra.mxu0 0.0
        %864 = vmatprep.subr.mxu0 0.0
        %865 = vmatpush1.msra.mxu0 0.0
        %866 = vmatprep.subr.mxu0 0.0
        %867 = vmatpush1.msra.mxu0 0.0
        %868 = vmatprep.subr.mxu0 0.0
        %869 = vmatpush1.msra.mxu0 0.0
        %870 = vmatprep.subr.mxu0 0.0
        %871 = vmatpush1.msra.mxu0 0.0
        %872 = vmatprep.subr.mxu0 0.0
        %873 = vmatpush1.msra.mxu0 0.0
        %874 = vmatprep.subr.mxu0 0.0
        %875 = vmatpush1.msra.mxu0 0.0
        %876 = vmatprep.subr.mxu0 0.0
        %877 = vmatpush1.msra.mxu0 0.0
        %878 = vmatprep.subr.mxu0 0.0
        %879 = vmatpush1.msra.mxu0 0.0
        %880 = vmatprep.subr.mxu0 0.0
        %881 = vmatpush1.msra.mxu0 0.0
        %882 = vmatprep.subr.mxu0 0.0
        %883 = vmatpush1.msra.mxu0 0.0
        %884 = vmatprep.subr.mxu0 0.0
        %885 = vmatpush1.msra.mxu0 0.0
        %886 = vmatprep.subr.mxu0 0.0
        %887 = vmatpush1.msra.mxu0 0.0
        %888 = vmatprep.subr.mxu0 0.0
        %889 = vmatpush1.msra.mxu0 0.0
        %890 = vmatprep.subr.mxu0 0.0
        %891 = vmatpush1.msra.mxu0 0.0
        %892 = vmatprep.subr.mxu0 0.0
        %893 = vmatpush1.msra.mxu0 0.0
        %894 = vmatprep.subr.mxu0 0.0
        %895 = vmatpush1.msra.mxu0 0.0
        %896 = vmatprep.subr.mxu0 0.0
        %897 = vmatpush1.msra.mxu0 0.0
        %898 = vmatprep.subr.mxu0 0.0
        %899 = vmatpush1.msra.mxu0 0.0
        %900 = vmatprep.subr.mxu0 0.0
        %901 = vmatpush1.msra.mxu0 0.0
        %902 = vmatprep.subr.mxu0 0.0
        %903 = vmatpush1.msra.mxu0 0.0
        %904 = vmatprep.subr.mxu0 0.0
        %905 = vmatpush1.msra.mxu0 0.0
        %906 = vmatprep.subr.mxu0 0.0
        %907 = vmatpush1.msra.mxu0 0.0
        %908 = vmatprep.subr.mxu0 0.0
        %909 = vmatpush1.msra.mxu0 0.0
        %910 = vmatprep.subr.mxu0 0.0
        %911 = vmatpush1.msra.mxu0 0.0
        %912 = vmatprep.subr.mxu0 0.0
        %913 = vmatpush1.msra.mxu0 0.0
        %914 = vmatprep.subr.mxu0 0.0
        %915 = vmatpush1.msra.mxu0 0.0
        %916 = vmatprep.subr.mxu0 0.0
        %917 = vmatpush1.msra.mxu0 0.0
        %918 = vmatprep.subr.mxu0 0.0
        %919 = vmatpush1.msra.mxu0 0.0
        %920 = vmatprep.subr.mxu0 0.0
        %921 = vmatpush1.msra.mxu0 0.0
        %922 = vmatprep.mubr.f32.mxu0 0.0
        %923 = vmatmul.mubr.f32.gmra.mrb[0].mxu0 %v856
        %v924 = vpop.f32.mrb[0].mxu0
        %v925 = vadd.f32 0.0, %v924
        %v926 = vpop.f32.mrb[0].mxu0
        %927 = vdwg.mxu0
        %v928 = vld [vmem:[#allocation10 + $0x8] sm:$0xff]
        %v930 = vsel %vm584, %v925, 0
        %932 = vmatprep.subr.mxu0 0.0
        %933 = vmatpush1.msra.mxu0 %v928
        %934 = vmatprep.subr.mxu0 0.0
        %935 = vmatpush1.msra.mxu0 0.0
        %936 = vmatprep.subr.mxu0 0.0
        %937 = vmatpush1.msra.mxu0 0.0
        %938 = vmatprep.subr.mxu0 0.0
        %939 = vmatpush1.msra.mxu0 0.0
        %940 = vmatprep.subr.mxu0 0.0
        %941 = vmatpush1.msra.mxu0 0.0
        %942 = vmatprep.subr.mxu0 0.0
        %943 = vmatpush1.msra.mxu0 0.0
        %944 = vmatprep.subr.mxu0 0.0
        %945 = vmatpush1.msra.mxu0 0.0
        %946 = vmatprep.subr.mxu0 0.0
        %947 = vmatpush1.msra.mxu0 0.0
        %948 = vmatprep.subr.mxu0 0.0
        %949 = vmatpush1.msra.mxu0 0.0
        %950 = vmatprep.subr.mxu0 0.0
        %951 = vmatpush1.msra.mxu0 0.0
        %952 = vmatprep.subr.mxu0 0.0
        %953 = vmatpush1.msra.mxu0 0.0
        %954 = vmatprep.subr.mxu0 0.0
        %955 = vmatpush1.msra.mxu0 0.0
        %956 = vmatprep.subr.mxu0 0.0
        %957 = vmatpush1.msra.mxu0 0.0
        %958 = vmatprep.subr.mxu0 0.0
        %959 = vmatpush1.msra.mxu0 0.0
        %960 = vmatprep.subr.mxu0 0.0
        %961 = vmatpush1.msra.mxu0 0.0
        %962 = vmatprep.subr.mxu0 0.0
        %963 = vmatpush1.msra.mxu0 0.0
        %964 = vmatprep.subr.mxu0 0.0
        %965 = vmatpush1.msra.mxu0 0.0
        %966 = vmatprep.subr.mxu0 0.0
        %967 = vmatpush1.msra.mxu0 0.0
        %968 = vmatprep.subr.mxu0 0.0
        %969 = vmatpush1.msra.mxu0 0.0
        %970 = vmatprep.subr.mxu0 0.0
        %971 = vmatpush1.msra.mxu0 0.0
        %972 = vmatprep.subr.mxu0 0.0
        %973 = vmatpush1.msra.mxu0 0.0
        %974 = vmatprep.subr.mxu0 0.0
        %975 = vmatpush1.msra.mxu0 0.0
        %976 = vmatprep.subr.mxu0 0.0
        %977 = vmatpush1.msra.mxu0 0.0
        %978 = vmatprep.subr.mxu0 0.0
        %979 = vmatpush1.msra.mxu0 0.0
        %980 = vmatprep.subr.mxu0 0.0
        %981 = vmatpush1.msra.mxu0 0.0
        %982 = vmatprep.subr.mxu0 0.0
        %983 = vmatpush1.msra.mxu0 0.0
        %984 = vmatprep.subr.mxu0 0.0
        %985 = vmatpush1.msra.mxu0 0.0
        %986 = vmatprep.subr.mxu0 0.0
        %987 = vmatpush1.msra.mxu0 0.0
        %988 = vmatprep.subr.mxu0 0.0
        %989 = vmatpush1.msra.mxu0 0.0
        %990 = vmatprep.subr.mxu0 0.0
        %991 = vmatpush1.msra.mxu0 0.0
        %992 = vmatprep.subr.mxu0 0.0
        %993 = vmatpush1.msra.mxu0 0.0
        %994 = vmatprep.subr.mxu0 0.0
        %995 = vmatpush1.msra.mxu0 0.0
        %996 = vmatprep.mubr.f32.mxu0 0.0
        %997 = vmatmul.mubr.f32.gmra.mrb[0].mxu0 %v930
        %v998 = vpop.f32.mrb[0].mxu0
        %v999 = vadd.f32 0.0, %v998
        %v1000 = vpop.f32.mrb[0].mxu0
        %1001 = vdwg.mxu0
        %v1003 = vsel %vm584, %v752, 0
        %1005 = vmatprep.subr.mxu0 0.0
        %1006 = vmatpush1.msra.mxu0 %v755
        %1007 = vmatprep.subr.mxu0 0.0
        %1008 = vmatpush1.msra.mxu0 0.0
        %1009 = vmatprep.subr.mxu0 0.0
        %1010 = vmatpush1.msra.mxu0 0.0
        %1011 = vmatprep.subr.mxu0 0.0
        %1012 = vmatpush1.msra.mxu0 0.0
        %1013 = vmatprep.subr.mxu0 0.0
        %1014 = vmatpush1.msra.mxu0 0.0
        %1015 = vmatprep.subr.mxu0 0.0
        %1016 = vmatpush1.msra.mxu0 0.0
        %1017 = vmatprep.subr.mxu0 0.0
        %1018 = vmatpush1.msra.mxu0 0.0
        %1019 = vmatprep.subr.mxu0 0.0
        %1020 = vmatpush1.msra.mxu0 0.0
        %1021 = vmatprep.subr.mxu0 0.0
        %1022 = vmatpush1.msra.mxu0 0.0
        %1023 = vmatprep.subr.mxu0 0.0
        %1024 = vmatpush1.msra.mxu0 0.0
        %1025 = vmatprep.subr.mxu0 0.0
        %1026 = vmatpush1.msra.mxu0 0.0
        %1027 = vmatprep.subr.mxu0 0.0
        %1028 = vmatpush1.msra.mxu0 0.0
        %1029 = vmatprep.subr.mxu0 0.0
        %1030 = vmatpush1.msra.mxu0 0.0
        %1031 = vmatprep.subr.mxu0 0.0
        %1032 = vmatpush1.msra.mxu0 0.0
        %1033 = vmatprep.subr.mxu0 0.0
        %1034 = vmatpush1.msra.mxu0 0.0
        %1035 = vmatprep.subr.mxu0 0.0
        %1036 = vmatpush1.msra.mxu0 0.0
        %1037 = vmatprep.subr.mxu0 0.0
        %1038 = vmatpush1.msra.mxu0 0.0
        %1039 = vmatprep.subr.mxu0 0.0
        %1040 = vmatpush1.msra.mxu0 0.0
        %1041 = vmatprep.subr.mxu0 0.0
        %1042 = vmatpush1.msra.mxu0 0.0
        %1043 = vmatprep.subr.mxu0 0.0
        %1044 = vmatpush1.msra.mxu0 0.0
        %1045 = vmatprep.subr.mxu0 0.0
        %1046 = vmatpush1.msra.mxu0 0.0
        %1047 = vmatprep.subr.mxu0 0.0
        %1048 = vmatpush1.msra.mxu0 0.0
        %1049 = vmatprep.subr.mxu0 0.0
        %1050 = vmatpush1.msra.mxu0 0.0
        %1051 = vmatprep.subr.mxu0 0.0
        %1052 = vmatpush1.msra.mxu0 0.0
        %1053 = vmatprep.subr.mxu0 0.0
        %1054 = vmatpush1.msra.mxu0 0.0
        %1055 = vmatprep.subr.mxu0 0.0
        %1056 = vmatpush1.msra.mxu0 0.0
        %1057 = vmatprep.subr.mxu0 0.0
        %1058 = vmatpush1.msra.mxu0 0.0
        %1059 = vmatprep.subr.mxu0 0.0
        %1060 = vmatpush1.msra.mxu0 0.0
        %1061 = vmatprep.subr.mxu0 0.0
        %1062 = vmatpush1.msra.mxu0 0.0
        %1063 = vmatprep.subr.mxu0 0.0
        %1064 = vmatpush1.msra.mxu0 0.0
        %1065 = vmatprep.subr.mxu0 0.0
        %1066 = vmatpush1.msra.mxu0 0.0
        %1067 = vmatprep.subr.mxu0 0.0
        %1068 = vmatpush1.msra.mxu0 0.0
        %1069 = vmatprep.mubr.f32.mxu0 0.0
        %1070 = vmatmul.mubr.f32.gmra.mrb[0].mxu0 %v1003
        %v1071 = vpop.f32.mrb[0].mxu0
        %v1072 = vadd.f32 %v999, %v1071
        %v1073 = vpop.f32.mrb[0].mxu0
        %1074 = vdwg.mxu0
        %1075 = vrot.lane.b32.xlu0 %v487, 112
        %v1076 = vpop.permute.xlu0 %1075
        %1077 = vrot.lane.b32.xlu0 %v576, 112
        %v1078 = vpop.permute.xlu0 %1077
        %1079 = vrot.lane.b32.xlu0 %v581, 112
        %v1080 = vpop.permute.xlu0 %1079
        %v1081 = vsel %vm584, %v1076, 0
        %v1083 = vsel %vm584, %v1078, 0
        %v1085 = vsel %vm584, %v1080, 0
        %1087 = vmatprep.subr.mxu0 0.0
        %1088 = vmatpush1.xpose.msra.mxu0 %v1083
        %1089 = vmatprep.subr.mxu0 0.0
        %1090 = vmatpush1.xpose.msra.mxu0 %v1085
        %1091 = vmatprep.subr.mxu0 0.0
        %1092 = vmatpush1.xpose.msra.mxu0 0.0
        %1093 = vmatprep.subr.mxu0 0.0
        %1094 = vmatpush1.xpose.msra.mxu0 0.0
        %1095 = vmatprep.subr.mxu0 0.0
        %1096 = vmatpush1.xpose.msra.mxu0 0.0
        %1097 = vmatprep.subr.mxu0 0.0
        %1098 = vmatpush1.xpose.msra.mxu0 0.0
        %1099 = vmatprep.subr.mxu0 0.0
        %1100 = vmatpush1.xpose.msra.mxu0 0.0
        %1101 = vmatprep.subr.mxu0 0.0
        %1102 = vmatpush1.xpose.msra.mxu0 0.0
        %1103 = vmatprep.subr.mxu0 0.0
        %1104 = vmatpush1.xpose.msra.mxu0 0.0
        %1105 = vmatprep.subr.mxu0 0.0
        %1106 = vmatpush1.xpose.msra.mxu0 0.0
        %1107 = vmatprep.subr.mxu0 0.0
        %1108 = vmatpush1.xpose.msra.mxu0 0.0
        %1109 = vmatprep.subr.mxu0 0.0
        %1110 = vmatpush1.xpose.msra.mxu0 0.0
        %1111 = vmatprep.subr.mxu0 0.0
        %1112 = vmatpush1.xpose.msra.mxu0 0.0
        %1113 = vmatprep.subr.mxu0 0.0
        %1114 = vmatpush1.xpose.msra.mxu0 0.0
        %1115 = vmatprep.subr.mxu0 0.0
        %1116 = vmatpush1.xpose.msra.mxu0 0.0
        %1117 = vmatprep.subr.mxu0 0.0
        %1118 = vmatpush1.xpose.msra.mxu0 0.0
        %1119 = vmatprep.subr.mxu0 0.0
        %1120 = vmatpush1.xpose.msra.mxu0 0.0
        %1121 = vmatprep.subr.mxu0 0.0
        %1122 = vmatpush1.xpose.msra.mxu0 0.0
        %1123 = vmatprep.subr.mxu0 0.0
        %1124 = vmatpush1.xpose.msra.mxu0 0.0
        %1125 = vmatprep.subr.mxu0 0.0
        %1126 = vmatpush1.xpose.msra.mxu0 0.0
        %1127 = vmatprep.subr.mxu0 0.0
        %1128 = vmatpush1.xpose.msra.mxu0 0.0
        %1129 = vmatprep.subr.mxu0 0.0
        %1130 = vmatpush1.xpose.msra.mxu0 0.0
        %1131 = vmatprep.subr.mxu0 0.0
        %1132 = vmatpush1.xpose.msra.mxu0 0.0
        %1133 = vmatprep.subr.mxu0 0.0
        %1134 = vmatpush1.xpose.msra.mxu0 0.0
        %1135 = vmatprep.subr.mxu0 0.0
        %1136 = vmatpush1.xpose.msra.mxu0 0.0
        %1137 = vmatprep.subr.mxu0 0.0
        %1138 = vmatpush1.xpose.msra.mxu0 0.0
        %1139 = vmatprep.subr.mxu0 0.0
        %1140 = vmatpush1.xpose.msra.mxu0 0.0
        %1141 = vmatprep.subr.mxu0 0.0
        %1142 = vmatpush1.xpose.msra.mxu0 0.0
        %1143 = vmatprep.subr.mxu0 0.0
        %1144 = vmatpush1.xpose.msra.mxu0 0.0
        %1145 = vmatprep.subr.mxu0 0.0
        %1146 = vmatpush1.xpose.msra.mxu0 0.0
        %1147 = vmatprep.subr.mxu0 0.0
        %1148 = vmatpush1.xpose.msra.mxu0 0.0
        %1149 = vmatprep.subr.mxu0 0.0
        %1150 = vmatpush1.xpose.msra.mxu0 0.0
        %1151 = vmatprep.mubr.f32.mxu0 0.0
        %1152 = vmatmul.mubr.f32.gmra.mrb[0].mxu0 %v1081
        %v1153 = vpop.f32.mrb[0].mxu0
        %v1154 = vadd.f32 0.0, %v1153
        %v1155 = vpop.f32.mrb[0].mxu0
        %1156 = vdwg.mxu0
        %v1157 = vsel %vm664, %v1154, -inf
        %1158 = vmax.xlane.f32.xlu0 %v1157
        %v1159 = vpop.xlane.xlu0 %1158
        %v1160 = vsub.f32 %v1154, %v1159
        %v1161 = vmul.f32 %v1160, 1.442695
        %v1162 = vpow.pop %v1161
        %v1163 = vsel %vm664, %v1162, 0.0
        %1164 = vadd.xlane.f32.xlu0 %v1163
        %v1165 = vpop.xlane.xlu0 %1164
        %v1166 = vrcp.pop %v1165
        %v1167 = vmul.f32 %v1162, %v1166
        %1168 = vrot.lane.b32.xlu0 %v576, 80
        %v1169 = vpop.permute.xlu0 %1168
        %1170 = vrot.lane.b32.xlu0 %v581, 80
        %v1171 = vpop.permute.xlu0 %1170
        %v1175 = vsel %vm664, %v1167, 0
        %1177 = vmatprep.subr.mxu0 0.0
        %1178 = vmatpush1.msra.mxu0 %v1169
        %1179 = vmatprep.subr.mxu0 0.0
        %1180 = vmatpush1.msra.mxu0 %v1171
        %1181 = vmatprep.subr.mxu0 0.0
        %1182 = vmatpush1.msra.mxu0 0.0
        %1183 = vmatprep.subr.mxu0 0.0
        %1184 = vmatpush1.msra.mxu0 0.0
        %1185 = vmatprep.subr.mxu0 0.0
        %1186 = vmatpush1.msra.mxu0 0.0
        %1187 = vmatprep.subr.mxu0 0.0
        %1188 = vmatpush1.msra.mxu0 0.0
        %1189 = vmatprep.subr.mxu0 0.0
        %1190 = vmatpush1.msra.mxu0 0.0
        %1191 = vmatprep.subr.mxu0 0.0
        %1192 = vmatpush1.msra.mxu0 0.0
        %1193 = vmatprep.subr.mxu0 0.0
        %1194 = vmatpush1.msra.mxu0 0.0
        %1195 = vmatprep.subr.mxu0 0.0
        %1196 = vmatpush1.msra.mxu0 0.0
        %1197 = vmatprep.subr.mxu0 0.0
        %1198 = vmatpush1.msra.mxu0 0.0
        %1199 = vmatprep.subr.mxu0 0.0
        %1200 = vmatpush1.msra.mxu0 0.0
        %1201 = vmatprep.subr.mxu0 0.0
        %1202 = vmatpush1.msra.mxu0 0.0
        %1203 = vmatprep.subr.mxu0 0.0
        %1204 = vmatpush1.msra.mxu0 0.0
        %1205 = vmatprep.subr.mxu0 0.0
        %1206 = vmatpush1.msra.mxu0 0.0
        %1207 = vmatprep.subr.mxu0 0.0
        %1208 = vmatpush1.msra.mxu0 0.0
        %1209 = vmatprep.subr.mxu0 0.0
        %1210 = vmatpush1.msra.mxu0 0.0
        %1211 = vmatprep.subr.mxu0 0.0
        %1212 = vmatpush1.msra.mxu0 0.0
        %1213 = vmatprep.subr.mxu0 0.0
        %1214 = vmatpush1.msra.mxu0 0.0
        %1215 = vmatprep.subr.mxu0 0.0
        %1216 = vmatpush1.msra.mxu0 0.0
        %1217 = vmatprep.subr.mxu0 0.0
        %1218 = vmatpush1.msra.mxu0 0.0
        %1219 = vmatprep.subr.mxu0 0.0
        %1220 = vmatpush1.msra.mxu0 0.0
        %1221 = vmatprep.subr.mxu0 0.0
        %1222 = vmatpush1.msra.mxu0 0.0
        %1223 = vmatprep.subr.mxu0 0.0
        %1224 = vmatpush1.msra.mxu0 0.0
        %1225 = vmatprep.subr.mxu0 0.0
        %1226 = vmatpush1.msra.mxu0 0.0
        %1227 = vmatprep.subr.mxu0 0.0
        %1228 = vmatpush1.msra.mxu0 0.0
        %1229 = vmatprep.subr.mxu0 0.0
        %1230 = vmatpush1.msra.mxu0 0.0
        %1231 = vmatprep.subr.mxu0 0.0
        %1232 = vmatpush1.msra.mxu0 0.0
        %1233 = vmatprep.subr.mxu0 0.0
        %1234 = vmatpush1.msra.mxu0 0.0
        %1235 = vmatprep.subr.mxu0 0.0
        %1236 = vmatpush1.msra.mxu0 0.0
        %1237 = vmatprep.subr.mxu0 0.0
        %1238 = vmatpush1.msra.mxu0 0.0
        %1239 = vmatprep.subr.mxu0 0.0
        %1240 = vmatpush1.msra.mxu0 0.0
        %1241 = vmatprep.mubr.f32.mxu0 0.0
        %1242 = vmatmul.mubr.f32.gmra.mrb[0].mxu0 %v1175
        %v1243 = vpop.f32.mrb[0].mxu0
        %v1244 = vadd.f32 0.0, %v1243
        %v1245 = vpop.f32.mrb[0].mxu0
        %1246 = vdwg.mxu0
        %v1247 = vld [vmem:[#allocation10 + $0x10] sm:$0xff]
        %v1249 = vsel %vm584, %v1244, 0
        %1251 = vmatprep.subr.mxu0 0.0
        %1252 = vmatpush1.msra.mxu0 %v1247
        %1253 = vmatprep.subr.mxu0 0.0
        %1254 = vmatpush1.msra.mxu0 0.0
        %1255 = vmatprep.subr.mxu0 0.0
        %1256 = vmatpush1.msra.mxu0 0.0
        %1257 = vmatprep.subr.mxu0 0.0
        %1258 = vmatpush1.msra.mxu0 0.0
        %1259 = vmatprep.subr.mxu0 0.0
        %1260 = vmatpush1.msra.mxu0 0.0
        %1261 = vmatprep.subr.mxu0 0.0
        %1262 = vmatpush1.msra.mxu0 0.0
        %1263 = vmatprep.subr.mxu0 0.0
        %1264 = vmatpush1.msra.mxu0 0.0
        %1265 = vmatprep.subr.mxu0 0.0
        %1266 = vmatpush1.msra.mxu0 0.0
        %1267 = vmatprep.subr.mxu0 0.0
        %1268 = vmatpush1.msra.mxu0 0.0
        %1269 = vmatprep.subr.mxu0 0.0
        %1270 = vmatpush1.msra.mxu0 0.0
        %1271 = vmatprep.subr.mxu0 0.0
        %1272 = vmatpush1.msra.mxu0 0.0
        %1273 = vmatprep.subr.mxu0 0.0
        %1274 = vmatpush1.msra.mxu0 0.0
        %1275 = vmatprep.subr.mxu0 0.0
        %1276 = vmatpush1.msra.mxu0 0.0
        %1277 = vmatprep.subr.mxu0 0.0
        %1278 = vmatpush1.msra.mxu0 0.0
        %1279 = vmatprep.subr.mxu0 0.0
        %1280 = vmatpush1.msra.mxu0 0.0
        %1281 = vmatprep.subr.mxu0 0.0
        %1282 = vmatpush1.msra.mxu0 0.0
        %1283 = vmatprep.subr.mxu0 0.0
        %1284 = vmatpush1.msra.mxu0 0.0
        %1285 = vmatprep.subr.mxu0 0.0
        %1286 = vmatpush1.msra.mxu0 0.0
        %1287 = vmatprep.subr.mxu0 0.0
        %1288 = vmatpush1.msra.mxu0 0.0
        %1289 = vmatprep.subr.mxu0 0.0
        %1290 = vmatpush1.msra.mxu0 0.0
        %1291 = vmatprep.subr.mxu0 0.0
        %1292 = vmatpush1.msra.mxu0 0.0
        %1293 = vmatprep.subr.mxu0 0.0
        %1294 = vmatpush1.msra.mxu0 0.0
        %1295 = vmatprep.subr.mxu0 0.0
        %1296 = vmatpush1.msra.mxu0 0.0
        %1297 = vmatprep.subr.mxu0 0.0
        %1298 = vmatpush1.msra.mxu0 0.0
        %1299 = vmatprep.subr.mxu0 0.0
        %1300 = vmatpush1.msra.mxu0 0.0
        %1301 = vmatprep.subr.mxu0 0.0
        %1302 = vmatpush1.msra.mxu0 0.0
        %1303 = vmatprep.subr.mxu0 0.0
        %1304 = vmatpush1.msra.mxu0 0.0
        %1305 = vmatprep.subr.mxu0 0.0
        %1306 = vmatpush1.msra.mxu0 0.0
        %1307 = vmatprep.subr.mxu0 0.0
        %1308 = vmatpush1.msra.mxu0 0.0
        %1309 = vmatprep.subr.mxu0 0.0
        %1310 = vmatpush1.msra.mxu0 0.0
        %1311 = vmatprep.subr.mxu0 0.0
        %1312 = vmatpush1.msra.mxu0 0.0
        %1313 = vmatprep.subr.mxu0 0.0
        %1314 = vmatpush1.msra.mxu0 0.0
        %1315 = vmatprep.mubr.f32.mxu0 0.0
        %1316 = vmatmul.mubr.f32.gmra.mrb[0].mxu0 %v1249
        %v1317 = vpop.f32.mrb[0].mxu0
        %v1318 = vadd.f32 0.0, %v1317
        %v1319 = vpop.f32.mrb[0].mxu0
        %1320 = vdwg.mxu0
        %v1321 = vadd.f32 %v1072, %v1318
        %1322 = vrot.lane.b32.xlu0 %v487, 104
        %v1323 = vpop.permute.xlu0 %1322
        %1324 = vrot.lane.b32.xlu0 %v576, 104
        %v1325 = vpop.permute.xlu0 %1324
        %1326 = vrot.lane.b32.xlu0 %v581, 104
        %v1327 = vpop.permute.xlu0 %1326
        %v1328 = vsel %vm584, %v1323, 0
        %v1330 = vsel %vm584, %v1325, 0
        %v1332 = vsel %vm584, %v1327, 0
        %1334 = vmatprep.subr.mxu0 0.0
        %1335 = vmatpush1.xpose.msra.mxu0 %v1330
        %1336 = vmatprep.subr.mxu0 0.0
        %1337 = vmatpush1.xpose.msra.mxu0 %v1332
        %1338 = vmatprep.subr.mxu0 0.0
        %1339 = vmatpush1.xpose.msra.mxu0 0.0
        %1340 = vmatprep.subr.mxu0 0.0
        %1341 = vmatpush1.xpose.msra.mxu0 0.0
        %1342 = vmatprep.subr.mxu0 0.0
        %1343 = vmatpush1.xpose.msra.mxu0 0.0
        %1344 = vmatprep.subr.mxu0 0.0
        %1345 = vmatpush1.xpose.msra.mxu0 0.0
        %1346 = vmatprep.subr.mxu0 0.0
        %1347 = vmatpush1.xpose.msra.mxu0 0.0
        %1348 = vmatprep.subr.mxu0 0.0
        %1349 = vmatpush1.xpose.msra.mxu0 0.0
        %1350 = vmatprep.subr.mxu0 0.0
        %1351 = vmatpush1.xpose.msra.mxu0 0.0
        %1352 = vmatprep.subr.mxu0 0.0
        %1353 = vmatpush1.xpose.msra.mxu0 0.0
        %1354 = vmatprep.subr.mxu0 0.0
        %1355 = vmatpush1.xpose.msra.mxu0 0.0
        %1356 = vmatprep.subr.mxu0 0.0
        %1357 = vmatpush1.xpose.msra.mxu0 0.0
        %1358 = vmatprep.subr.mxu0 0.0
        %1359 = vmatpush1.xpose.msra.mxu0 0.0
        %1360 = vmatprep.subr.mxu0 0.0
        %1361 = vmatpush1.xpose.msra.mxu0 0.0
        %1362 = vmatprep.subr.mxu0 0.0
        %1363 = vmatpush1.xpose.msra.mxu0 0.0
        %1364 = vmatprep.subr.mxu0 0.0
        %1365 = vmatpush1.xpose.msra.mxu0 0.0
        %1366 = vmatprep.subr.mxu0 0.0
        %1367 = vmatpush1.xpose.msra.mxu0 0.0
        %1368 = vmatprep.subr.mxu0 0.0
        %1369 = vmatpush1.xpose.msra.mxu0 0.0
        %1370 = vmatprep.subr.mxu0 0.0
        %1371 = vmatpush1.xpose.msra.mxu0 0.0
        %1372 = vmatprep.subr.mxu0 0.0
        %1373 = vmatpush1.xpose.msra.mxu0 0.0
        %1374 = vmatprep.subr.mxu0 0.0
        %1375 = vmatpush1.xpose.msra.mxu0 0.0
        %1376 = vmatprep.subr.mxu0 0.0
        %1377 = vmatpush1.xpose.msra.mxu0 0.0
        %1378 = vmatprep.subr.mxu0 0.0
        %1379 = vmatpush1.xpose.msra.mxu0 0.0
        %1380 = vmatprep.subr.mxu0 0.0
        %1381 = vmatpush1.xpose.msra.mxu0 0.0
        %1382 = vmatprep.subr.mxu0 0.0
        %1383 = vmatpush1.xpose.msra.mxu0 0.0
        %1384 = vmatprep.subr.mxu0 0.0
        %1385 = vmatpush1.xpose.msra.mxu0 0.0
        %1386 = vmatprep.subr.mxu0 0.0
        %1387 = vmatpush1.xpose.msra.mxu0 0.0
        %1388 = vmatprep.subr.mxu0 0.0
        %1389 = vmatpush1.xpose.msra.mxu0 0.0
        %1390 = vmatprep.subr.mxu0 0.0
        %1391 = vmatpush1.xpose.msra.mxu0 0.0
        %1392 = vmatprep.subr.mxu0 0.0
        %1393 = vmatpush1.xpose.msra.mxu0 0.0
        %1394 = vmatprep.subr.mxu0 0.0
        %1395 = vmatpush1.xpose.msra.mxu0 0.0
        %1396 = vmatprep.subr.mxu0 0.0
        %1397 = vmatpush1.xpose.msra.mxu0 0.0
        %1398 = vmatprep.mubr.f32.mxu0 0.0
        %1399 = vmatmul.mubr.f32.gmra.mrb[0].mxu0 %v1328
        %v1400 = vpop.f32.mrb[0].mxu0
        %v1401 = vadd.f32 0.0, %v1400
        %v1402 = vpop.f32.mrb[0].mxu0
        %1403 = vdwg.mxu0
        %v1404 = vsel %vm664, %v1401, -inf
        %1405 = vmax.xlane.f32.xlu0 %v1404
        %v1406 = vpop.xlane.xlu0 %1405
        %v1407 = vsub.f32 %v1401, %v1406
        %v1408 = vmul.f32 %v1407, 1.442695
        %v1409 = vpow.pop %v1408
        %v1410 = vsel %vm664, %v1409, 0.0
        %1411 = vadd.xlane.f32.xlu0 %v1410
        %v1412 = vpop.xlane.xlu0 %1411
        %v1413 = vrcp.pop %v1412
        %v1414 = vmul.f32 %v1409, %v1413
        %1415 = vrot.lane.b32.xlu0 %v576, 72
        %v1416 = vpop.permute.xlu0 %1415
        %1417 = vrot.lane.b32.xlu0 %v581, 72
        %v1418 = vpop.permute.xlu0 %1417
        %v1422 = vsel %vm664, %v1414, 0
        %1424 = vmatprep.subr.mxu0 0.0
        %1425 = vmatpush1.msra.mxu0 %v1416
        %1426 = vmatprep.subr.mxu0 0.0
        %1427 = vmatpush1.msra.mxu0 %v1418
        %1428 = vmatprep.subr.mxu0 0.0
        %1429 = vmatpush1.msra.mxu0 0.0
        %1430 = vmatprep.subr.mxu0 0.0
        %1431 = vmatpush1.msra.mxu0 0.0
        %1432 = vmatprep.subr.mxu0 0.0
        %1433 = vmatpush1.msra.mxu0 0.0
        %1434 = vmatprep.subr.mxu0 0.0
        %1435 = vmatpush1.msra.mxu0 0.0
        %1436 = vmatprep.subr.mxu0 0.0
        %1437 = vmatpush1.msra.mxu0 0.0
        %1438 = vmatprep.subr.mxu0 0.0
        %1439 = vmatpush1.msra.mxu0 0.0
        %1440 = vmatprep.subr.mxu0 0.0
        %1441 = vmatpush1.msra.mxu0 0.0
        %1442 = vmatprep.subr.mxu0 0.0
        %1443 = vmatpush1.msra.mxu0 0.0
        %1444 = vmatprep.subr.mxu0 0.0
        %1445 = vmatpush1.msra.mxu0 0.0
        %1446 = vmatprep.subr.mxu0 0.0
        %1447 = vmatpush1.msra.mxu0 0.0
        %1448 = vmatprep.subr.mxu0 0.0
        %1449 = vmatpush1.msra.mxu0 0.0
        %1450 = vmatprep.subr.mxu0 0.0
        %1451 = vmatpush1.msra.mxu0 0.0
        %1452 = vmatprep.subr.mxu0 0.0
        %1453 = vmatpush1.msra.mxu0 0.0
        %1454 = vmatprep.subr.mxu0 0.0
        %1455 = vmatpush1.msra.mxu0 0.0
        %1456 = vmatprep.subr.mxu0 0.0
        %1457 = vmatpush1.msra.mxu0 0.0
        %1458 = vmatprep.subr.mxu0 0.0
        %1459 = vmatpush1.msra.mxu0 0.0
        %1460 = vmatprep.subr.mxu0 0.0
        %1461 = vmatpush1.msra.mxu0 0.0
        %1462 = vmatprep.subr.mxu0 0.0
        %1463 = vmatpush1.msra.mxu0 0.0
        %1464 = vmatprep.subr.mxu0 0.0
        %1465 = vmatpush1.msra.mxu0 0.0
        %1466 = vmatprep.subr.mxu0 0.0
        %1467 = vmatpush1.msra.mxu0 0.0
        %1468 = vmatprep.subr.mxu0 0.0
        %1469 = vmatpush1.msra.mxu0 0.0
        %1470 = vmatprep.subr.mxu0 0.0
        %1471 = vmatpush1.msra.mxu0 0.0
        %1472 = vmatprep.subr.mxu0 0.0
        %1473 = vmatpush1.msra.mxu0 0.0
        %1474 = vmatprep.subr.mxu0 0.0
        %1475 = vmatpush1.msra.mxu0 0.0
        %1476 = vmatprep.subr.mxu0 0.0
        %1477 = vmatpush1.msra.mxu0 0.0
        %1478 = vmatprep.subr.mxu0 0.0
        %1479 = vmatpush1.msra.mxu0 0.0
        %1480 = vmatprep.subr.mxu0 0.0
        %1481 = vmatpush1.msra.mxu0 0.0
        %1482 = vmatprep.subr.mxu0 0.0
        %1483 = vmatpush1.msra.mxu0 0.0
        %1484 = vmatprep.subr.mxu0 0.0
        %1485 = vmatpush1.msra.mxu0 0.0
        %1486 = vmatprep.subr.mxu0 0.0
        %1487 = vmatpush1.msra.mxu0 0.0
        %1488 = vmatprep.mubr.f32.mxu0 0.0
        %1489 = vmatmul.mubr.f32.gmra.mrb[0].mxu0 %v1422
        %v1490 = vpop.f32.mrb[0].mxu0
        %v1491 = vadd.f32 0.0, %v1490
        %v1492 = vpop.f32.mrb[0].mxu0
        %1493 = vdwg.mxu0
        %v1494 = vld [vmem:[#allocation10 + $0x18] sm:$0xff]
        %v1496 = vsel %vm584, %v1491, 0
        %1498 = vmatprep.subr.mxu0 0.0
        %1499 = vmatpush1.msra.mxu0 %v1494
        %1500 = vmatprep.subr.mxu0 0.0
        %1501 = vmatpush1.msra.mxu0 0.0
        %1502 = vmatprep.subr.mxu0 0.0
        %1503 = vmatpush1.msra.mxu0 0.0
        %1504 = vmatprep.subr.mxu0 0.0
        %1505 = vmatpush1.msra.mxu0 0.0
        %1506 = vmatprep.subr.mxu0 0.0
        %1507 = vmatpush1.msra.mxu0 0.0
        %1508 = vmatprep.subr.mxu0 0.0
        %1509 = vmatpush1.msra.mxu0 0.0
        %1510 = vmatprep.subr.mxu0 0.0
        %1511 = vmatpush1.msra.mxu0 0.0
        %1512 = vmatprep.subr.mxu0 0.0
        %1513 = vmatpush1.msra.mxu0 0.0
        %1514 = vmatprep.subr.mxu0 0.0
        %1515 = vmatpush1.msra.mxu0 0.0
        %1516 = vmatprep.subr.mxu0 0.0
        %1517 = vmatpush1.msra.mxu0 0.0
        %1518 = vmatprep.subr.mxu0 0.0
        %1519 = vmatpush1.msra.mxu0 0.0
        %1520 = vmatprep.subr.mxu0 0.0
        %1521 = vmatpush1.msra.mxu0 0.0
        %1522 = vmatprep.subr.mxu0 0.0
        %1523 = vmatpush1.msra.mxu0 0.0
        %1524 = vmatprep.subr.mxu0 0.0
        %1525 = vmatpush1.msra.mxu0 0.0
        %1526 = vmatprep.subr.mxu0 0.0
        %1527 = vmatpush1.msra.mxu0 0.0
        %1528 = vmatprep.subr.mxu0 0.0
        %1529 = vmatpush1.msra.mxu0 0.0
        %1530 = vmatprep.subr.mxu0 0.0
        %1531 = vmatpush1.msra.mxu0 0.0
        %1532 = vmatprep.subr.mxu0 0.0
        %1533 = vmatpush1.msra.mxu0 0.0
        %1534 = vmatprep.subr.mxu0 0.0
        %1535 = vmatpush1.msra.mxu0 0.0
        %1536 = vmatprep.subr.mxu0 0.0
        %1537 = vmatpush1.msra.mxu0 0.0
        %1538 = vmatprep.subr.mxu0 0.0
        %1539 = vmatpush1.msra.mxu0 0.0
        %1540 = vmatprep.subr.mxu0 0.0
        %1541 = vmatpush1.msra.mxu0 0.0
        %1542 = vmatprep.subr.mxu0 0.0
        %1543 = vmatpush1.msra.mxu0 0.0
        %1544 = vmatprep.subr.mxu0 0.0
        %1545 = vmatpush1.msra.mxu0 0.0
        %1546 = vmatprep.subr.mxu0 0.0
        %1547 = vmatpush1.msra.mxu0 0.0
        %1548 = vmatprep.subr.mxu0 0.0
        %1549 = vmatpush1.msra.mxu0 0.0
        %1550 = vmatprep.subr.mxu0 0.0
        %1551 = vmatpush1.msra.mxu0 0.0
        %1552 = vmatprep.subr.mxu0 0.0
        %1553 = vmatpush1.msra.mxu0 0.0
        %1554 = vmatprep.subr.mxu0 0.0
        %1555 = vmatpush1.msra.mxu0 0.0
        %1556 = vmatprep.subr.mxu0 0.0
        %1557 = vmatpush1.msra.mxu0 0.0
        %1558 = vmatprep.subr.mxu0 0.0
        %1559 = vmatpush1.msra.mxu0 0.0
        %1560 = vmatprep.subr.mxu0 0.0
        %1561 = vmatpush1.msra.mxu0 0.0
        %1562 = vmatprep.mubr.f32.mxu0 0.0
        %1563 = vmatmul.mubr.f32.gmra.mrb[0].mxu0 %v1496
        %v1564 = vpop.f32.mrb[0].mxu0
        %v1565 = vadd.f32 0.0, %v1564
        %v1566 = vpop.f32.mrb[0].mxu0
        %1567 = vdwg.mxu0
        %v1568 = vadd.f32 %v1321, %v1565
        %v1569 = vld [vmem:[%s7] sm:$0x1]
        %v1571 = vlaneseq
        %v1572 = vshrl.u32 %v1571, 7
        %v1573 = vsub.s32 0, %v1572
        %v1574 = vrot.slane %v1569, %v1573
        %v1576 = vadd.f32 %v1568, %v1574
        %1577 = vst.msk [vmem:[%s403] sm:$0xff] %vm416, %v1576
        %s1578 = sand.u32 %s215, 1
        %s1579 = scalar_lea.sflag [#allocation4], %s1578
        %s1580 = sand.u32 %s215, 1
        %s1581 = smul.addr %s1580, 8
        %s1582 = scalar_lea.vmem [#allocation11], %s1581
        // Predicated region
        $region73: #{tpu_custom_call.1} parent=51 // pred_check
          %p1583 = pneg %p225
        $region74: #{tpu_custom_call.1} parent=51 // pred_check_branch
          %1585 = sbr.rel (%p1583) target = $region76
        $region75: #{tpu_custom_call.1} parent=51 // pred_region
          %s1587 = ssub.s32 128, 128
          %1588 = vsyncadd %s1579, %s1587
          %s1589 = smul.addr %s29, 128
          %s1590 = scalar_lea.hbm %s8, %s1589
          %s1592 = sshll.u32 %s1582, 4
          %s1593 = int_to_ptr.vmem [resolvable:$true] %s1592
          %1595 = dma.vmem_to_hbm [thread:$0]  %s1593, 128, %s1590, %s1579
        $region76: #{tpu_custom_call.1} parent=51 // pred_fallthru
          _
      $region52: #{tpu_custom_call.1} parent=5 // pred_fallthru
        _
      %p1596 = scmp.le.s32.totalorder 2, %s24
      // Predicated region
      $region77: #{tpu_custom_call.1} parent=5 // pred_check
        %p1597 = pneg %p1596
      $region78: #{tpu_custom_call.1} parent=5 // pred_check_branch
        %1599 = sbr.rel (%p1597) target = $region80
      $region79: #{tpu_custom_call.1} parent=5 // pred_region
        %s1600 = ssub.s32 %s24, 2
        // Predicated region
        $region81: #{tpu_custom_call.1} parent=79 // pred_check
          %p1601 = pneg %p231
        $region82: #{tpu_custom_call.1} parent=79 // pred_check_branch
          %1603 = sbr.rel (%p1601) target = $region84
        $region83: #{tpu_custom_call.1} parent=79 // pred_region
          %s1604 = sand.u32 %s216, 1
          %s1605 = scalar_lea.sflag [#allocation4], %s1604
          %s1606 = sand.u32 %s216, 1
          %s1607 = smul.addr %s1606, 8
          %s1608 = scalar_lea.vmem [#allocation11], %s1607
          %1609 = dma.done %s1605, 128
        $region84: #{tpu_custom_call.1} parent=79 // pred_fallthru
          _
      $region80: #{tpu_custom_call.1} parent=5 // pred_fallthru
        _
    $region6: #{tpu_custom_call.1} parent=1 // loop_footer
      %s28 = sadd.s32 1, %s24
    $region7: #{tpu_custom_call.1} parent=1 // loop_footer_branch
      %23 = sbr.rel target = $region3
    $region8: #{tpu_custom_call.1} parent=1 // loop_exit
      _
    %1610 = vsyncpa [#allocation3], 1
    %s1611 = scalar_lea.sflag [#allocation3], 1
    %1612 = vsyncpa %s1611, 1
    %1613 = vsyncpa [#allocation6], 1
    %s1614 = scalar_lea.sflag [#allocation6], 1
    %1615 = vsyncpa %s1614, 1
    %1616 = vsyncpa [#allocation9], 1
    %1617 = vsyncpa [#allocation4], 1
    %s1618 = scalar_lea.sflag [#allocation4], 1
    %1619 = vsyncpa %s1618, 1

</llo_original>
